<compile_context>
chip_gen: v7x
topology: tpu7x:2x2x1
jax: 0.10.0
libtpu: 0.0.40
codegen_flags: <defaults>
</compile_context>

<pallas_src>
import functools
import math

import jax
import jax.numpy as jnp
from jax.experimental import pallas as pl

# --- model dims (small, consistent with the module's forward: B=4, T=8) ---
B_SZ = 4        # batch
T_SEQ = 8       # sequence length
C_EMB = 32      # n_embd
N_HEAD = 4      # n_head
HEAD_D = C_EMB // N_HEAD
HIDDEN = 4 * C_EMB
LN_EPS = 1e-5
NEG_INF = -1e30


def _gelu_tanh(x):
    # PyTorch nn.GELU(approximate='tanh')
    c = math.sqrt(2.0 / math.pi)
    return 0.5 * x * (1.0 + jnp.tanh(c * (x + 0.044715 * x * x * x)))


def _ln_noaffine(x):
    # LayerNorm with the affine (w, b) folded into the following matmul weights.
    mu = jnp.mean(x, axis=-1, keepdims=True)
    xc = x - mu
    var = jnp.mean(xc * xc, axis=-1, keepdims=True)
    return xc * jax.lax.rsqrt(var + LN_EPS)


def block_kernel(x_ref, bias_ref, hmask_ref,
                 wq_ref, bq_ref, wk_ref, bk_ref,
                 wvo_ref, battn_ref,
                 wfc_ref, bfc_ref, wmlp_ref, bmlp_ref,
                 o_ref, *, n_head):
    f32, bf16 = jnp.float32, jnp.bfloat16
    n_tok, n_embd = x_ref.shape
    H = n_head

    x = x_ref[...].astype(f32)                                   # (N, C)

    # ---- ln_1 (affine folded into the projections) + causal self-attention --
    h1 = _ln_noaffine(x)
    h1b = h1.astype(bf16)

    # Q / K projections: one MXU push each (LN affine + 1/sqrt(D) pre-folded).
    q = jnp.dot(h1b, wq_ref[...], preferred_element_type=f32) + bq_ref[...]
    k = jnp.dot(h1b, wk_ref[...], preferred_element_type=f32) + bk_ref[...]

    # Per-head scores for all heads in ONE (H*N, C) x (C, N) matmul at full
    # 128-row sublane fill: replicate q head-major along rows and zero the
    # lanes outside each row-block's head, then contract over C (q @ k^T).
    q_rep = jnp.concatenate([q] * H, axis=0)                      # (H*N, C)
    qm = (q_rep * hmask_ref[...]).astype(bf16)
    s = jax.lax.dot_general(qm, k.astype(bf16),
                            (((1,), (1,)), ((), ())),
                            preferred_element_type=f32)           # (H*N, N)

    # Block-diagonal causal additive bias over the flattened (batch*seq) axis.
    s = s.reshape(H, n_tok, n_tok) + bias_ref[...]                # (H, N, N)
    s = s - jnp.max(s, axis=-1, keepdims=True)
    p = jnp.exp(s)
    p = p * pl.reciprocal(jnp.sum(p, axis=-1, keepdims=True), approx=True)

    # PV with the output projection folded into V:
    #   sum_h P_h @ (ln1(x) @ W_vo[h])  ==  sum_h (P_h @ ln1(x)) @ W_vo[h]
    z = jnp.dot(p.reshape(H * n_tok, n_tok).astype(bf16), h1b,
                preferred_element_type=f32)                       # (H*N, C)
    y = jnp.einsum("hnc,hcd->hnd",
                   z.reshape(H, n_tok, n_embd).astype(bf16), wvo_ref[...],
                   preferred_element_type=f32)                    # (H, N, C)
    x = x + jnp.sum(y, axis=0) + battn_ref[...]

    # ---- ln_2 (affine folded into w_fc) + MLP -------------------------------
    h2 = _ln_noaffine(x).astype(bf16)
    fc = jnp.dot(h2, wfc_ref[...], preferred_element_type=f32) + bfc_ref[...]
    g = _gelu_tanh(fc)
    mlp = jnp.dot(g.astype(bf16), wmlp_ref[...],
                  preferred_element_type=f32) + bmlp_ref[...]
    x = x + mlp

    # TODO(synk): lane-dense (multiple-of-128) output packing once C >= 128;
    # at C=32 the whole writeback is 4 KB.
    o_ref[...] = x.astype(o_ref.dtype)


def _block_causal_bias(batch, seq):
    """(1, B*T, B*T) additive bias: 0 inside each batch's causal block, -1e30 else."""
    n = batch * seq
    idx = jnp.arange(n)
    same = (idx[:, None] // seq) == (idx[None, :] // seq)
    causal = idx[None, :] <= idx[:, None]
    return jnp.where(same & causal, 0.0, NEG_INF).astype(jnp.float32)[None]


def _head_lane_mask(n_tok):
    """(H*n_tok, C) 0/1 mask: lane c is kept in row-block h iff c // head_d == h."""
    row = jnp.arange(N_HEAD * n_tok)[:, None]
    col = jnp.arange(C_EMB)[None, :]
    return ((col // HEAD_D) == (row // n_tok)).astype(jnp.float32)


def _prep_params(params):
    """Fold LN affines, softmax scale and the attention output projection into the
    matmul weights (all wrapper/XLA-side, free) and cast matmul weights to bf16."""
    C, H, D, F = C_EMB, N_HEAD, HEAD_D, HIDDEN
    f32, bf16 = jnp.float32, jnp.bfloat16

    ln1w = params["ln1_w"].reshape(C)
    ln1b = params["ln1_b"].reshape(C)
    ln2w = params["ln2_w"].reshape(C)
    ln2b = params["ln2_b"].reshape(C)

    w_qkv = params["w_qkv"]                        # (C, 3C)
    b_qkv = params["b_qkv"].reshape(3 * C)
    w_q, w_k, w_v = w_qkv[:, :C], w_qkv[:, C:2 * C], w_qkv[:, 2 * C:]
    b_q, b_k, b_v = b_qkv[:C], b_qkv[C:2 * C], b_qkv[2 * C:]

    scale = 1.0 / math.sqrt(D)
    # ln1(x) @ W + b  ==  norm(x) @ (ln1_w[:,None] * W) + (ln1_b @ W + b)
    wq_f = (ln1w[:, None] * w_q) * scale           # softmax scale folded into Q
    bq_f = (ln1b @ w_q + b_q) * scale
    wk_f = ln1w[:, None] * w_k
    bk_f = ln1b @ w_k + b_k
    wv_f = ln1w[:, None] * w_v
    bv_f = ln1b @ w_v + b_v

    # Fold the attention output projection into V (per head):
    #   W_vo[h] = W_v[:, hD:(h+1)D] @ W_attn[hD:(h+1)D, :]   -> (H, C, C)
    # The V bias passes through the row-stochastic softmax, so it collapses
    # (with b_attn) into a single output bias.
    w_attn = params["w_attn_proj"]                 # (C, C)
    b_attn = params["b_attn_proj"].reshape(C)
    w_vo = jnp.einsum("chd,hdk->hck",
                      wv_f.reshape(C, H, D), w_attn.reshape(H, D, C))
    b_attn_tot = bv_f @ w_attn + b_attn

    w_fc = params["w_fc"]                          # (C, 4C)
    b_fc = params["b_fc"].reshape(F)
    wfc_f = ln2w[:, None] * w_fc
    bfc_f = ln2b @ w_fc + b_fc

    return dict(
        wq=wq_f.astype(bf16), bq=bq_f.reshape(1, C).astype(f32),
        wk=wk_f.astype(bf16), bk=bk_f.reshape(1, C).astype(f32),
        wvo=w_vo.astype(bf16), battn=b_attn_tot.reshape(1, C).astype(f32),
        wfc=wfc_f.astype(bf16), bfc=bfc_f.reshape(1, F).astype(f32),
        wmlp=params["w_mlp_proj"].astype(bf16),
        bmlp=params["b_mlp_proj"].reshape(1, C).astype(f32),
    )


@jax.jit
def gpt_block(x, params):
    B, T, C = x.shape
    assert C == C_EMB
    n_tok = B * T
    prep = _prep_params(params)
    bias = _block_causal_bias(B, T)        # position-only constants (few KB);
    hmask = _head_lane_mask(n_tok)         # generate in-kernel once N scales.

    kern = functools.partial(block_kernel, n_head=N_HEAD)

    out = pl.pallas_call(
        kern,
        out_shape=jax.ShapeDtypeStruct((n_tok, C), x.dtype),
    )(x.reshape(n_tok, C), bias, hmask,
      prep["wq"], prep["bq"], prep["wk"], prep["bk"],
      prep["wvo"], prep["battn"],
      prep["wfc"], prep["bfc"], prep["wmlp"], prep["bmlp"])
    return out.reshape(B, T, C)


def block_reference(x, params):
    """Pure-JAX f32 reference matching the PyTorch module."""
    B, T, C = x.shape
    H, D = N_HEAD, HEAD_D

    def ln(z, w, b):
        mu = jnp.mean(z, -1, keepdims=True)
        zc = z - mu
        var = jnp.mean(zc * zc, -1, keepdims=True)
        return zc * jax.lax.rsqrt(var + LN_EPS) * w.reshape(-1) + b.reshape(-1)

    h = ln(x, params["ln1_w"], params["ln1_b"])
    qkv = h @ params["w_qkv"] + params["b_qkv"].reshape(-1)
    q, k, v = jnp.split(qkv, 3, axis=-1)

    def heads(t):
        return t.reshape(B, T, H, D).transpose(0, 2, 1, 3)

    q, k, v = heads(q), heads(k), heads(v)
    s = jnp.einsum("bhqd,bhkd->bhqk", q, k) / math.sqrt(D)
    mask = jnp.tril(jnp.ones((T, T), dtype=bool))
    s = jnp.where(mask, s, -jnp.inf)
    p = jax.nn.softmax(s, axis=-1)
    y = jnp.einsum("bhqk,bhkd->bhqd", p, v)
    y = y.transpose(0, 2, 1, 3).reshape(B, T, C)
    x = x + y @ params["w_attn_proj"] + params["b_attn_proj"].reshape(-1)

    h2 = ln(x, params["ln2_w"], params["ln2_b"])
    fc = h2 @ params["w_fc"] + params["b_fc"].reshape(-1)
    g = _gelu_tanh(fc)
    x = x + g @ params["w_mlp_proj"] + params["b_mlp_proj"].reshape(-1)
    return x


def init_params(key):
    ks = jax.random.split(key, 8)
    std = 0.02
    # Linear weights stored as (in, out); biases as (1, out).
    return {
        "ln1_w": jnp.ones((1, C_EMB), jnp.float32),
        "ln1_b": jnp.zeros((1, C_EMB), jnp.float32),
        "w_qkv": std * jax.random.normal(ks[0], (C_EMB, 3 * C_EMB), jnp.float32),
        "b_qkv": std * jax.random.normal(ks[1], (1, 3 * C_EMB), jnp.float32),
        "w_attn_proj": std * jax.random.normal(ks[2], (C_EMB, C_EMB), jnp.float32),
        "b_attn_proj": std * jax.random.normal(ks[3], (1, C_EMB), jnp.float32),
        "ln2_w": jnp.ones((1, C_EMB), jnp.float32),
        "ln2_b": jnp.zeros((1, C_EMB), jnp.float32),
        "w_fc": std * jax.random.normal(ks[4], (C_EMB, HIDDEN), jnp.float32),
        "b_fc": std * jax.random.normal(ks[5], (1, HIDDEN), jnp.float32),
        "w_mlp_proj": std * jax.random.normal(ks[6], (HIDDEN, C_EMB), jnp.float32),
        "b_mlp_proj": std * jax.random.normal(ks[7], (1, C_EMB), jnp.float32),
    }


if __name__ == "__main__":
    key = jax.random.PRNGKey(0)
    kx, kp = jax.random.split(key)
    x = jax.random.normal(kx, (B_SZ, T_SEQ, C_EMB), jnp.float32)
    params = init_params(kp)

    out = gpt_block(x, params)
    jax.block_until_ready(out)
    assert out.shape == (B_SZ, T_SEQ, C_EMB)
    assert jnp.all(jnp.isfinite(out))

    ref = block_reference(x, params)
    err = jnp.max(jnp.abs(out - ref))
    assert err < 2e-2, f"kernel/reference mismatch: max abs err = {err}"
    print("KERNEL_OK")
</pallas_src>

<mosaic_0001>
module attributes {stable_mosaic.version = 11 : i64} {
  func.func @block_kernel(%arg0: memref<32x32xf32, #tpu.memory_space<vmem>>, %arg1: memref<1x32x32xf32, #tpu.memory_space<vmem>>, %arg2: memref<128x32xf32, #tpu.memory_space<vmem>>, %arg3: memref<32x32xbf16, #tpu.memory_space<vmem>>, %arg4: memref<1x32xf32, #tpu.memory_space<vmem>>, %arg5: memref<32x32xbf16, #tpu.memory_space<vmem>>, %arg6: memref<1x32xf32, #tpu.memory_space<vmem>>, %arg7: memref<4x32x32xbf16, #tpu.memory_space<vmem>>, %arg8: memref<1x32xf32, #tpu.memory_space<vmem>>, %arg9: memref<32x128xbf16, #tpu.memory_space<vmem>>, %arg10: memref<1x128xf32, #tpu.memory_space<vmem>>, %arg11: memref<128x32xbf16, #tpu.memory_space<vmem>>, %arg12: memref<1x32xf32, #tpu.memory_space<vmem>>, %arg13: memref<32x32xf32, #tpu.memory_space<vmem>>) attributes {dimension_semantics = [], scalar_prefetch = 0 : i64, scratch_operands = 0 : i64, tpu.core_type = #tpu.core_type<tc>} {
    %c0 = arith.constant 0 : index
    %c0_0 = arith.constant 0 : index
    %0 = vector.load %arg0[%c0, %c0_0] : memref<32x32xf32, #tpu.memory_space<vmem>>, vector<32x32xf32>
    %cst = arith.constant dense<0.000000e+00> : vector<32xf32>
    %1 = vector.multi_reduction <add>, %0, %cst [1] : vector<32x32xf32> to vector<32xf32>
    %2 = vector.shape_cast %1 : vector<32xf32> to vector<32x1xf32>
    %cst_1 = arith.constant 3.200000e+01 : f32
    %3 = vector.broadcast %cst_1 : f32 to vector<32x1xf32>
    %4 = arith.divf %2, %3 : vector<32x1xf32>
    %5 = vector.broadcast %4 : vector<32x1xf32> to vector<32x32xf32>
    %6 = arith.subf %0, %5 : vector<32x32xf32>
    %7 = arith.mulf %6, %6 : vector<32x32xf32>
    %cst_2 = arith.constant dense<0.000000e+00> : vector<32xf32>
    %8 = vector.multi_reduction <add>, %7, %cst_2 [1] : vector<32x32xf32> to vector<32xf32>
    %9 = vector.shape_cast %8 : vector<32xf32> to vector<32x1xf32>
    %cst_3 = arith.constant 3.200000e+01 : f32
    %10 = vector.broadcast %cst_3 : f32 to vector<32x1xf32>
    %11 = arith.divf %9, %10 : vector<32x1xf32>
    %cst_4 = arith.constant 9.99999974E-6 : f32
    %12 = vector.broadcast %cst_4 : f32 to vector<32x1xf32>
    %13 = arith.addf %11, %12 : vector<32x1xf32>
    %14 = math.rsqrt %13 : vector<32x1xf32>
    %15 = vector.broadcast %14 : vector<32x1xf32> to vector<32x32xf32>
    %16 = arith.mulf %6, %15 : vector<32x32xf32>
    %17 = arith.truncf %16 : vector<32x32xf32> to vector<32x32xbf16>
    %c0_5 = arith.constant 0 : index
    %c0_6 = arith.constant 0 : index
    %18 = vector.load %arg3[%c0_5, %c0_6] : memref<32x32xbf16, #tpu.memory_space<vmem>>, vector<32x32xbf16>
    %cst_7 = arith.constant dense<0.000000e+00> : vector<32x32xf32>
    %19 = tpu.matmul %17, %18, %cst_7 {dimension_numbers = #tpu.dot_dimension_numbers<[1], [0], [0], [1], [0, 0, 1, 1], [], []>} : vector<32x32xbf16>, vector<32x32xbf16>, vector<32x32xf32> -> vector<32x32xf32>
    %c0_8 = arith.constant 0 : index
    %c0_9 = arith.constant 0 : index
    %20 = vector.load %arg4[%c0_8, %c0_9] : memref<1x32xf32, #tpu.memory_space<vmem>>, vector<1x32xf32>
    %21 = vector.broadcast %20 : vector<1x32xf32> to vector<32x32xf32>
    %22 = arith.addf %19, %21 : vector<32x32xf32>
    %c0_10 = arith.constant 0 : index
    %c0_11 = arith.constant 0 : index
    %23 = vector.load %arg5[%c0_10, %c0_11] : memref<32x32xbf16, #tpu.memory_space<vmem>>, vector<32x32xbf16>
    %cst_12 = arith.constant dense<0.000000e+00> : vector<32x32xf32>
    %24 = tpu.matmul %17, %23, %cst_12 {dimension_numbers = #tpu.dot_dimension_numbers<[1], [0], [0], [1], [0, 0, 1, 1], [], []>} : vector<32x32xbf16>, vector<32x32xbf16>, vector<32x32xf32> -> vector<32x32xf32>
    %c0_13 = arith.constant 0 : index
    %c0_14 = arith.constant 0 : index
    %25 = vector.load %arg6[%c0_13, %c0_14] : memref<1x32xf32, #tpu.memory_space<vmem>>, vector<1x32xf32>
    %26 = vector.broadcast %25 : vector<1x32xf32> to vector<32x32xf32>
    %27 = arith.addf %24, %26 : vector<32x32xf32>
    %28 = tpu.concatenate %22, %22, %22, %22 in 0 : vector<32x32xf32>, vector<32x32xf32>, vector<32x32xf32>, vector<32x32xf32> -> vector<128x32xf32>
    %c0_15 = arith.constant 0 : index
    %c0_16 = arith.constant 0 : index
    %29 = vector.load %arg2[%c0_15, %c0_16] : memref<128x32xf32, #tpu.memory_space<vmem>>, vector<128x32xf32>
    %30 = arith.mulf %28, %29 : vector<128x32xf32>
    %31 = arith.truncf %30 : vector<128x32xf32> to vector<128x32xbf16>
    %32 = arith.truncf %27 : vector<32x32xf32> to vector<32x32xbf16>
    %cst_17 = arith.constant dense<0.000000e+00> : vector<128x32xf32>
    %33 = tpu.matmul %31, %32, %cst_17 {dimension_numbers = #tpu.dot_dimension_numbers<[1], [1], [0], [0], [0, 0, 1, 0], [], []>} : vector<128x32xbf16>, vector<32x32xbf16>, vector<128x32xf32> -> vector<128x32xf32>
    %34 = vector.shape_cast %33 : vector<128x32xf32> to vector<4x32x32xf32>
    %c0_18 = arith.constant 0 : index
    %c0_19 = arith.constant 0 : index
    %c0_20 = arith.constant 0 : index
    %35 = vector.load %arg1[%c0_18, %c0_19, %c0_20] : memref<1x32x32xf32, #tpu.memory_space<vmem>>, vector<1x32x32xf32>
    %36 = vector.broadcast %35 : vector<1x32x32xf32> to vector<4x32x32xf32>
    %37 = arith.addf %34, %36 : vector<4x32x32xf32>
    %cst_21 = arith.constant dense<0xFF800000> : vector<4x32xf32>
    %38 = vector.multi_reduction <maximumf>, %37, %cst_21 [2] : vector<4x32x32xf32> to vector<4x32xf32>
    %39 = vector.shape_cast %38 : vector<4x32xf32> to vector<4x32x1xf32>
    %40 = vector.broadcast %39 : vector<4x32x1xf32> to vector<4x32x32xf32>
    %41 = arith.subf %37, %40 : vector<4x32x32xf32>
    %42 = math.exp %41 : vector<4x32x32xf32>
    %cst_22 = arith.constant dense<0.000000e+00> : vector<4x32xf32>
    %43 = vector.multi_reduction <add>, %42, %cst_22 [2] : vector<4x32x32xf32> to vector<4x32xf32>
    %44 = vector.shape_cast %43 : vector<4x32xf32> to vector<4x32x1xf32>
    %45 = tpu.reciprocal %44 {approx = true} : vector<4x32x1xf32> -> vector<4x32x1xf32>
    %46 = vector.broadcast %45 : vector<4x32x1xf32> to vector<4x32x32xf32>
    %47 = arith.mulf %42, %46 : vector<4x32x32xf32>
    %48 = vector.shape_cast %47 : vector<4x32x32xf32> to vector<128x32xf32>
    %49 = arith.truncf %48 : vector<128x32xf32> to vector<128x32xbf16>
    %cst_23 = arith.constant dense<0.000000e+00> : vector<128x32xf32>
    %50 = tpu.matmul %49, %17, %cst_23 {dimension_numbers = #tpu.dot_dimension_numbers<[1], [0], [0], [1], [0, 0, 1, 1], [], []>} : vector<128x32xbf16>, vector<32x32xbf16>, vector<128x32xf32> -> vector<128x32xf32>
    %51 = vector.shape_cast %50 : vector<128x32xf32> to vector<4x32x32xf32>
    %52 = arith.truncf %51 : vector<4x32x32xf32> to vector<4x32x32xbf16>
    %c0_24 = arith.constant 0 : index
    %c0_25 = arith.constant 0 : index
    %c0_26 = arith.constant 0 : index
    %53 = vector.load %arg7[%c0_24, %c0_25, %c0_26] : memref<4x32x32xbf16, #tpu.memory_space<vmem>>, vector<4x32x32xbf16>
    "tpu.trace_start"() <{level = 10 : i32, message = "hnc,hcd->hnd"}> : () -> ()
    %cst_27 = arith.constant dense<0.000000e+00> : vector<4x32x32xf32>
    %54 = tpu.matmul %52, %53, %cst_27 {dimension_numbers = #tpu.dot_dimension_numbers<[2], [1], [1], [2], [0, 0, 0, 1, 1, 2], [0], [0]>} : vector<4x32x32xbf16>, vector<4x32x32xbf16>, vector<4x32x32xf32> -> vector<4x32x32xf32>
    "tpu.trace_stop"() : () -> ()
    %cst_28 = arith.constant dense<0.000000e+00> : vector<32x32xf32>
    %55 = vector.multi_reduction <add>, %54, %cst_28 [0] : vector<4x32x32xf32> to vector<32x32xf32>
    %56 = arith.addf %0, %55 : vector<32x32xf32>
    %c0_29 = arith.constant 0 : index
    %c0_30 = arith.constant 0 : index
    %57 = vector.load %arg8[%c0_29, %c0_30] : memref<1x32xf32, #tpu.memory_space<vmem>>, vector<1x32xf32>
    %58 = vector.broadcast %57 : vector<1x32xf32> to vector<32x32xf32>
    %59 = arith.addf %56, %58 : vector<32x32xf32>
    %cst_31 = arith.constant dense<0.000000e+00> : vector<32xf32>
    %60 = vector.multi_reduction <add>, %59, %cst_31 [1] : vector<32x32xf32> to vector<32xf32>
    %61 = vector.shape_cast %60 : vector<32xf32> to vector<32x1xf32>
    %cst_32 = arith.constant 3.200000e+01 : f32
    %62 = vector.broadcast %cst_32 : f32 to vector<32x1xf32>
    %63 = arith.divf %61, %62 : vector<32x1xf32>
    %64 = vector.broadcast %63 : vector<32x1xf32> to vector<32x32xf32>
    %65 = arith.subf %59, %64 : vector<32x32xf32>
    %66 = arith.mulf %65, %65 : vector<32x32xf32>
    %cst_33 = arith.constant dense<0.000000e+00> : vector<32xf32>
    %67 = vector.multi_reduction <add>, %66, %cst_33 [1] : vector<32x32xf32> to vector<32xf32>
    %68 = vector.shape_cast %67 : vector<32xf32> to vector<32x1xf32>
    %cst_34 = arith.constant 3.200000e+01 : f32
    %69 = vector.broadcast %cst_34 : f32 to vector<32x1xf32>
    %70 = arith.divf %68, %69 : vector<32x1xf32>
    %cst_35 = arith.constant 9.99999974E-6 : f32
    %71 = vector.broadcast %cst_35 : f32 to vector<32x1xf32>
    %72 = arith.addf %70, %71 : vector<32x1xf32>
    %73 = math.rsqrt %72 : vector<32x1xf32>
    %74 = vector.broadcast %73 : vector<32x1xf32> to vector<32x32xf32>
    %75 = arith.mulf %65, %74 : vector<32x32xf32>
    %76 = arith.truncf %75 : vector<32x32xf32> to vector<32x32xbf16>
    %c0_36 = arith.constant 0 : index
    %c0_37 = arith.constant 0 : index
    %77 = vector.load %arg9[%c0_36, %c0_37] : memref<32x128xbf16, #tpu.memory_space<vmem>>, vector<32x128xbf16>
    %cst_38 = arith.constant dense<0.000000e+00> : vector<32x128xf32>
    %78 = tpu.matmul %76, %77, %cst_38 {dimension_numbers = #tpu.dot_dimension_numbers<[1], [0], [0], [1], [0, 0, 1, 1], [], []>} : vector<32x32xbf16>, vector<32x128xbf16>, vector<32x128xf32> -> vector<32x128xf32>
    %c0_39 = arith.constant 0 : index
    %c0_40 = arith.constant 0 : index
    %79 = vector.load %arg10[%c0_39, %c0_40] : memref<1x128xf32, #tpu.memory_space<vmem>>, vector<1x128xf32>
    %80 = vector.broadcast %79 : vector<1x128xf32> to vector<32x128xf32>
    %81 = arith.addf %78, %80 : vector<32x128xf32>
    %cst_41 = arith.constant 5.000000e-01 : f32
    %82 = vector.broadcast %cst_41 : f32 to vector<32x128xf32>
    %83 = arith.mulf %82, %81 : vector<32x128xf32>
    %cst_42 = arith.constant 4.471500e-02 : f32
    %84 = vector.broadcast %cst_42 : f32 to vector<32x128xf32>
    %85 = arith.mulf %84, %81 : vector<32x128xf32>
    %86 = arith.mulf %85, %81 : vector<32x128xf32>
    %87 = arith.mulf %86, %81 : vector<32x128xf32>
    %88 = arith.addf %81, %87 : vector<32x128xf32>
    %cst_43 = arith.constant 0.797884583 : f32
    %89 = vector.broadcast %cst_43 : f32 to vector<32x128xf32>
    %90 = arith.mulf %89, %88 : vector<32x128xf32>
    %91 = math.tanh %90 : vector<32x128xf32>
    %cst_44 = arith.constant 1.000000e+00 : f32
    %92 = vector.broadcast %cst_44 : f32 to vector<32x128xf32>
    %93 = arith.addf %92, %91 : vector<32x128xf32>
    %94 = arith.mulf %83, %93 : vector<32x128xf32>
    %95 = arith.truncf %94 : vector<32x128xf32> to vector<32x128xbf16>
    %c0_45 = arith.constant 0 : index
    %c0_46 = arith.constant 0 : index
    %96 = vector.load %arg11[%c0_45, %c0_46] : memref<128x32xbf16, #tpu.memory_space<vmem>>, vector<128x32xbf16>
    %cst_47 = arith.constant dense<0.000000e+00> : vector<32x32xf32>
    %97 = tpu.matmul %95, %96, %cst_47 {dimension_numbers = #tpu.dot_dimension_numbers<[1], [0], [0], [1], [0, 0, 1, 1], [], []>} : vector<32x128xbf16>, vector<128x32xbf16>, vector<32x32xf32> -> vector<32x32xf32>
    %c0_48 = arith.constant 0 : index
    %c0_49 = arith.constant 0 : index
    %98 = vector.load %arg12[%c0_48, %c0_49] : memref<1x32xf32, #tpu.memory_space<vmem>>, vector<1x32xf32>
    %99 = vector.broadcast %98 : vector<1x32xf32> to vector<32x32xf32>
    %100 = arith.addf %97, %99 : vector<32x32xf32>
    %101 = arith.addf %59, %100 : vector<32x32xf32>
    %c0_50 = arith.constant 0 : index
    %c0_51 = arith.constant 0 : index
    %102 = vector.load %arg13[%c0_50, %c0_51] : memref<32x32xf32, #tpu.memory_space<vmem>>, vector<32x32xf32>
    tpu.vector_store %arg13[%c0_50, %c0_51], %101 {strides = array<i32>} : memref<32x32xf32, #tpu.memory_space<vmem>>, vector<32x32xf32>,
    return
  }
}

</mosaic_0001>

<llo_original>
// kernel: gpt_block.1
$region0: #{gpt_block.1}
  #allocation0 [shape = 'u32[]', space=smem, size = 0x4, offset = 0x4, fixed_abs, tag = 'smem constant byte address 0x4 - core index']
  #allocation1 [shape = 'u32[144,128]{1,0:T(1,128)}', space=vmem, size = 0x12000, scoped, tag = 'internal scratch']
  %s0 = inlined_call_operand.vmem [shape: f32[32,32], index: 0, kind: input, shape index: {}]
  %s1 = inlined_call_operand.vmem [shape: f32[1,32,32], index: 1, kind: input, shape index: {}]
  %s2 = inlined_call_operand.vmem [shape: f32[128,32], index: 2, kind: input, shape index: {}]
  %s3 = inlined_call_operand.vmem [shape: bf16[32,32], index: 3, kind: input, shape index: {}]
  %s4 = inlined_call_operand.vmem [shape: f32[1,32], index: 4, kind: input, shape index: {}]
  %s5 = inlined_call_operand.vmem [shape: bf16[32,32], index: 5, kind: input, shape index: {}]
  %s6 = inlined_call_operand.vmem [shape: f32[1,32], index: 6, kind: input, shape index: {}]
  %s7 = inlined_call_operand.vmem [shape: bf16[4,32,32], index: 7, kind: input, shape index: {}]
  %s8 = inlined_call_operand.vmem [shape: f32[1,32], index: 8, kind: input, shape index: {}]
  %s9 = inlined_call_operand.vmem [shape: bf16[32,128], index: 9, kind: input, shape index: {}]
  %s10 = inlined_call_operand.vmem [shape: f32[1,128], index: 10, kind: input, shape index: {}]
  %s11 = inlined_call_operand.vmem [shape: bf16[128,32], index: 11, kind: input, shape index: {}]
  %s12 = inlined_call_operand.vmem [shape: f32[1,32], index: 12, kind: input, shape index: {}]
  %s13 = inlined_call_operand.hbm [shape: f32[32,32], index: 13, kind: output, shape index: {}]
  %s14 = sld [smem:[#allocation0]]
  $region62: #{gpt_block.1} parent=0
    _
  %s16 = ssub.s32 1, %s14
  %s17 = scalar_select 0, %s16, %s14
  $region1: #{gpt_block.1} parent=0
    #allocation2 [shape = 'u8[16384]{0}', space=vmem, size = 0x4000, scoped, tag = 'output window, operand 0, single buffered']
    #allocation3 [shape = 's32[1]{0}', space=sflag, size = 0x4, scoped, tag = 'scoped memory for gpt_block.1']
    %18 = vsyncpa [#allocation3], 0
    // Predicated region
    $region2: #{gpt_block.1} parent=1 // pred_check
      _
    $region3: #{gpt_block.1} parent=1 // pred_check_branch
      %20 = sbr.rel (0) target = $region5
    $region4: #{gpt_block.1} parent=1 // pred_region
      _
    $region5: #{gpt_block.1} parent=1 // pred_fallthru
      _
    // Predicated region
    $region6: #{gpt_block.1} parent=1 // pred_check
      _
    $region7: #{gpt_block.1} parent=1 // pred_check_branch
      %22 = sbr.rel (0) target = $region9
    $region8: #{gpt_block.1} parent=1 // pred_region
      _
    $region9: #{gpt_block.1} parent=1 // pred_fallthru
      _
    // Predicated region
    $region10: #{gpt_block.1} parent=1 // pred_check
      _
    $region11: #{gpt_block.1} parent=1 // pred_check_branch
      %24 = sbr.rel (0) target = $region13
    $region12: #{gpt_block.1} parent=1 // pred_region
      _
    $region13: #{gpt_block.1} parent=1 // pred_fallthru
      _
    // Predicated region
    $region14: #{gpt_block.1} parent=1 // pred_check
      _
    $region15: #{gpt_block.1} parent=1 // pred_check_branch
      %26 = sbr.rel (0) target = $region17
    $region16: #{gpt_block.1} parent=1 // pred_region
      _
    $region17: #{gpt_block.1} parent=1 // pred_fallthru
      _
    // Predicated region
    $region18: #{gpt_block.1} parent=1 // pred_check
      _
    $region19: #{gpt_block.1} parent=1 // pred_check_branch
      %28 = sbr.rel (0) target = $region21
    $region20: #{gpt_block.1} parent=1 // pred_region
      _
    $region21: #{gpt_block.1} parent=1 // pred_fallthru
      _
    // Predicated region
    $region22: #{gpt_block.1} parent=1 // pred_check
      _
    $region23: #{gpt_block.1} parent=1 // pred_check_branch
      %30 = sbr.rel (0) target = $region25
    $region24: #{gpt_block.1} parent=1 // pred_region
      _
    $region25: #{gpt_block.1} parent=1 // pred_fallthru
      _
    // Predicated region
    $region26: #{gpt_block.1} parent=1 // pred_check
      _
    $region27: #{gpt_block.1} parent=1 // pred_check_branch
      %32 = sbr.rel (0) target = $region29
    $region28: #{gpt_block.1} parent=1 // pred_region
      _
    $region29: #{gpt_block.1} parent=1 // pred_fallthru
      _
    // Predicated region
    $region30: #{gpt_block.1} parent=1 // pred_check
      _
    $region31: #{gpt_block.1} parent=1 // pred_check_branch
      %34 = sbr.rel (0) target = $region33
    $region32: #{gpt_block.1} parent=1 // pred_region
      _
    $region33: #{gpt_block.1} parent=1 // pred_fallthru
      _
    // Predicated region
    $region34: #{gpt_block.1} parent=1 // pred_check
      _
    $region35: #{gpt_block.1} parent=1 // pred_check_branch
      %36 = sbr.rel (0) target = $region37
    $region36: #{gpt_block.1} parent=1 // pred_region
      _
    $region37: #{gpt_block.1} parent=1 // pred_fallthru
      _
    // Predicated region
    $region38: #{gpt_block.1} parent=1 // pred_check
      _
    $region39: #{gpt_block.1} parent=1 // pred_check_branch
      %38 = sbr.rel (0) target = $region41
    $region40: #{gpt_block.1} parent=1 // pred_region
      _
    $region41: #{gpt_block.1} parent=1 // pred_fallthru
      _
    // Predicated region
    $region42: #{gpt_block.1} parent=1 // pred_check
      _
    $region43: #{gpt_block.1} parent=1 // pred_check_branch
      %40 = sbr.rel (0) target = $region45
    $region44: #{gpt_block.1} parent=1 // pred_region
      _
    $region45: #{gpt_block.1} parent=1 // pred_fallthru
      _
    // Predicated region
    $region46: #{gpt_block.1} parent=1 // pred_check
      _
    $region47: #{gpt_block.1} parent=1 // pred_check_branch
      %42 = sbr.rel (0) target = $region49
    $region48: #{gpt_block.1} parent=1 // pred_region
      _
    $region49: #{gpt_block.1} parent=1 // pred_fallthru
      _
    // Predicated region
    $region50: #{gpt_block.1} parent=1 // pred_check
      _
    $region51: #{gpt_block.1} parent=1 // pred_check_branch
      %44 = sbr.rel (0) target = $region53
    $region52: #{gpt_block.1} parent=1 // pred_region
      _
    $region53: #{gpt_block.1} parent=1 // pred_fallthru
      _
    %v46 = vld [vmem:[%s0] sm:$0xff]
    %v47 = vld [vmem:[%s0 + $0x8] sm:$0xff]
    %v48 = vld [vmem:[%s0 + $0x10] sm:$0xff]
    %v49 = vld [vmem:[%s0 + $0x18] sm:$0xff]
    %vm50 = vcmask 261120
    %v51 = vsel %vm50, %v46, 0.0
    %52 = vadd.xlane.f32.xlu0 %v51
    %v53 = vpop.xlane.xlu0 %52
    %v54 = vsel %vm50, %v47, 0.0
    %55 = vadd.xlane.f32.xlu0 %v54
    %v56 = vpop.xlane.xlu0 %55
    %v57 = vsel %vm50, %v48, 0.0
    %58 = vadd.xlane.f32.xlu0 %v57
    %v59 = vpop.xlane.xlu0 %58
    %v60 = vsel %vm50, %v49, 0.0
    %61 = vadd.xlane.f32.xlu0 %v60
    %v62 = vpop.xlane.xlu0 %61
    %v63 = vrcp.pop 32.0
    %v64 = vmul.f32 %v53, %v63
    %v65 = vmul.f32 %v56, %v63
    %v66 = vmul.f32 %v59, %v63
    %v67 = vmul.f32 %v62, %v63
    %v68 = vsub.f32 %v46, %v64
    %v69 = vsub.f32 %v47, %v65
    %v70 = vsub.f32 %v48, %v66
    %v71 = vsub.f32 %v49, %v67
    %v72 = vmul.f32 %v68, %v68
    %v73 = vmul.f32 %v69, %v69
    %v74 = vmul.f32 %v70, %v70
    %v75 = vmul.f32 %v71, %v71
    %v76 = vsel %vm50, %v72, 0.0
    %77 = vadd.xlane.f32.xlu0 %v76
    %v78 = vpop.xlane.xlu0 %77
    %v79 = vsel %vm50, %v73, 0.0
    %80 = vadd.xlane.f32.xlu0 %v79
    %v81 = vpop.xlane.xlu0 %80
    %v82 = vsel %vm50, %v74, 0.0
    %83 = vadd.xlane.f32.xlu0 %v82
    %v84 = vpop.xlane.xlu0 %83
    %v85 = vsel %vm50, %v75, 0.0
    %86 = vadd.xlane.f32.xlu0 %v85
    %v87 = vpop.xlane.xlu0 %86
    %v88 = vmul.f32 %v78, %v63
    %v89 = vmul.f32 %v81, %v63
    %v90 = vmul.f32 %v84, %v63
    %v91 = vmul.f32 %v87, %v63
    %v92 = vadd.f32 %v88, 1e-05
    %v93 = vadd.f32 %v89, 1e-05
    %v94 = vadd.f32 %v90, 1e-05
    %v95 = vadd.f32 %v91, 1e-05
    %v96 = vrsqrt.pop %v92
    %v97 = vrsqrt.pop %v93
    %v98 = vrsqrt.pop %v94
    %v99 = vrsqrt.pop %v95
    %v100 = vmul.f32 %v68, %v96
    %v101 = vmul.f32 %v69, %v97
    %v102 = vmul.f32 %v70, %v98
    %v103 = vmul.f32 %v71, %v99
    %v104 = vpack.c.bf16 %v101, %v100
    %v105 = vpack.c.bf16 %v103, %v102
    %v106 = vld [vmem:[%s3] sm:$0xf]
    %v107 = vld [vmem:[%s3 + $0x4] sm:$0xf]
    %v108 = vld [vmem:[%s3 + $0x8] sm:$0xf]
    %v109 = vld [vmem:[%s3 + $0xc] sm:$0xf]
    %v110 = vld [vmem:[%s4] sm:$0x1]
    %v112 = vlaneseq
    %v113 = vshrl.u32 %v112, 7
    %v114 = vsub.s32 0, %v113
    %v115 = vrot.slane %v110, %v114
    %v121 = vunpack.c.l.b16 %v106
    %v122 = vunpack.c.l.b16 %v107
    %v123 = vunpack.c.l.b16 %v108
    %v124 = vunpack.c.l.b16 %v109
    %v125 = vpack.c.b16 %v122, %v121
    %v126 = vpack.c.b16 %v124, %v123
    %v130 = vsel %vm50, %v104, 0
    %v133 = vsel %vm50, %v105, 0
    %135 = vmatprep.subr.bf16.mxu0 0
    %136 = vmatpush1.bf16.msra.mxu0 %v125
    %137 = vmatprep.subr.bf16.mxu0 0
    %138 = vmatpush1.bf16.msra.mxu0 %v126
    %139 = vmatprep.subr.bf16.mxu0 0
    %140 = vmatpush1.bf16.msra.mxu0 0
    %141 = vmatprep.subr.bf16.mxu0 0
    %142 = vmatpush1.bf16.msra.mxu0 0
    %143 = vmatprep.subr.bf16.mxu0 0
    %144 = vmatpush1.bf16.msra.mxu0 0
    %145 = vmatprep.subr.bf16.mxu0 0
    %146 = vmatpush1.bf16.msra.mxu0 0
    %147 = vmatprep.subr.bf16.mxu0 0
    %148 = vmatpush1.bf16.msra.mxu0 0
    %149 = vmatprep.subr.bf16.mxu0 0
    %150 = vmatpush1.bf16.msra.mxu0 0
    %151 = vmatprep.subr.bf16.mxu0 0
    %152 = vmatpush1.bf16.msra.mxu0 0
    %153 = vmatprep.subr.bf16.mxu0 0
    %154 = vmatpush1.bf16.msra.mxu0 0
    %155 = vmatprep.subr.bf16.mxu0 0
    %156 = vmatpush1.bf16.msra.mxu0 0
    %157 = vmatprep.subr.bf16.mxu0 0
    %158 = vmatpush1.bf16.msra.mxu0 0
    %159 = vmatprep.subr.bf16.mxu0 0
    %160 = vmatpush1.bf16.msra.mxu0 0
    %161 = vmatprep.subr.bf16.mxu0 0
    %162 = vmatpush1.bf16.msra.mxu0 0
    %163 = vmatprep.subr.bf16.mxu0 0
    %164 = vmatpush1.bf16.msra.mxu0 0
    %165 = vmatprep.subr.bf16.mxu0 0
    %166 = vmatpush1.bf16.msra.mxu0 0
    %167 = vmatprep.mubr.bf16.mxu0 0
    %168 = vmatmul.mubr.bf16.gmra.mrb[0].mxu0 %v130
    %v169 = vpop.f32.mrb[0].mxu0
    %v170 = vadd.f32 %v115, %v169
    %v171 = vpop.f32.mrb[0].mxu0
    %v172 = vpop.f32.mrb[0].mxu0
    %v173 = vadd.f32 %v115, %v172
    %v174 = vpop.f32.mrb[0].mxu0
    %175 = vmatprep.mubr.bf16.mxu0 0
    %176 = vmatmul.mubr.bf16.gmra.mrb[0].mxu0 %v133
    %v177 = vpop.f32.mrb[0].mxu0
    %v178 = vadd.f32 %v115, %v177
    %v179 = vpop.f32.mrb[0].mxu0
    %v180 = vpop.f32.mrb[0].mxu0
    %v181 = vadd.f32 %v115, %v180
    %v182 = vpop.f32.mrb[0].mxu0
    %183 = vdwg.mxu0
    %v184 = vld [vmem:[%s5] sm:$0xf]
    %v185 = vld [vmem:[%s5 + $0x4] sm:$0xf]
    %v186 = vld [vmem:[%s5 + $0x8] sm:$0xf]
    %v187 = vld [vmem:[%s5 + $0xc] sm:$0xf]
    %v188 = vld [vmem:[%s6] sm:$0x1]
    %v190 = vlaneseq
    %v191 = vshrl.u32 %v190, 7
    %v192 = vsub.s32 0, %v191
    %v193 = vrot.slane %v188, %v192
    %v199 = vunpack.c.l.b16 %v184
    %v200 = vunpack.c.l.b16 %v185
    %v201 = vunpack.c.l.b16 %v186
    %v202 = vunpack.c.l.b16 %v187
    %v203 = vpack.c.b16 %v200, %v199
    %v204 = vpack.c.b16 %v202, %v201
    %207 = vmatprep.subr.bf16.mxu0 0
    %208 = vmatpush1.bf16.msra.mxu0 %v203
    %209 = vmatprep.subr.bf16.mxu0 0
    %210 = vmatpush1.bf16.msra.mxu0 %v204
    %211 = vmatprep.subr.bf16.mxu0 0
    %212 = vmatpush1.bf16.msra.mxu0 0
    %213 = vmatprep.subr.bf16.mxu0 0
    %214 = vmatpush1.bf16.msra.mxu0 0
    %215 = vmatprep.subr.bf16.mxu0 0
    %216 = vmatpush1.bf16.msra.mxu0 0
    %217 = vmatprep.subr.bf16.mxu0 0
    %218 = vmatpush1.bf16.msra.mxu0 0
    %219 = vmatprep.subr.bf16.mxu0 0
    %220 = vmatpush1.bf16.msra.mxu0 0
    %221 = vmatprep.subr.bf16.mxu0 0
    %222 = vmatpush1.bf16.msra.mxu0 0
    %223 = vmatprep.subr.bf16.mxu0 0
    %224 = vmatpush1.bf16.msra.mxu0 0
    %225 = vmatprep.subr.bf16.mxu0 0
    %226 = vmatpush1.bf16.msra.mxu0 0
    %227 = vmatprep.subr.bf16.mxu0 0
    %228 = vmatpush1.bf16.msra.mxu0 0
    %229 = vmatprep.subr.bf16.mxu0 0
    %230 = vmatpush1.bf16.msra.mxu0 0
    %231 = vmatprep.subr.bf16.mxu0 0
    %232 = vmatpush1.bf16.msra.mxu0 0
    %233 = vmatprep.subr.bf16.mxu0 0
    %234 = vmatpush1.bf16.msra.mxu0 0
    %235 = vmatprep.subr.bf16.mxu0 0
    %236 = vmatpush1.bf16.msra.mxu0 0
    %237 = vmatprep.subr.bf16.mxu0 0
    %238 = vmatpush1.bf16.msra.mxu0 0
    %239 = vmatprep.mubr.bf16.mxu0 0
    %240 = vmatmul.mubr.bf16.gmra.mrb[0].mxu0 %v130
    %v241 = vpop.f32.mrb[0].mxu0
    %v242 = vadd.f32 %v193, %v241
    %v243 = vpop.f32.mrb[0].mxu0
    %v244 = vpop.f32.mrb[0].mxu0
    %v245 = vadd.f32 %v193, %v244
    %v246 = vpop.f32.mrb[0].mxu0
    %247 = vmatprep.mubr.bf16.mxu0 0
    %248 = vmatmul.mubr.bf16.gmra.mrb[0].mxu0 %v133
    %v249 = vpop.f32.mrb[0].mxu0
    %v250 = vadd.f32 %v193, %v249
    %v251 = vpop.f32.mrb[0].mxu0
    %v252 = vpop.f32.mrb[0].mxu0
    %v253 = vadd.f32 %v193, %v252
    %v254 = vpop.f32.mrb[0].mxu0
    %255 = vdwg.mxu0
    %v256 = vld [vmem:[%s2] sm:$0xff]
    %v257 = vld [vmem:[%s2 + $0x8] sm:$0xff]
    %v258 = vld [vmem:[%s2 + $0x10] sm:$0xff]
    %v259 = vld [vmem:[%s2 + $0x18] sm:$0xff]
    %v260 = vld [vmem:[%s2 + $0x20] sm:$0xff]
    %v261 = vld [vmem:[%s2 + $0x28] sm:$0xff]
    %v262 = vld [vmem:[%s2 + $0x30] sm:$0xff]
    %v263 = vld [vmem:[%s2 + $0x38] sm:$0xff]
    %v264 = vld [vmem:[%s2 + $0x40] sm:$0xff]
    %v265 = vld [vmem:[%s2 + $0x48] sm:$0xff]
    %v266 = vld [vmem:[%s2 + $0x50] sm:$0xff]
    %v267 = vld [vmem:[%s2 + $0x58] sm:$0xff]
    %v268 = vld [vmem:[%s2 + $0x60] sm:$0xff]
    %v269 = vld [vmem:[%s2 + $0x68] sm:$0xff]
    %v270 = vld [vmem:[%s2 + $0x70] sm:$0xff]
    %v271 = vld [vmem:[%s2 + $0x78] sm:$0xff]
    %v272 = vmul.f32 %v170, %v256
    %v273 = vmul.f32 %v173, %v257
    %v274 = vmul.f32 %v178, %v258
    %v275 = vmul.f32 %v181, %v259
    %v276 = vmul.f32 %v170, %v260
    %v277 = vmul.f32 %v173, %v261
    %v278 = vmul.f32 %v178, %v262
    %v279 = vmul.f32 %v181, %v263
    %v280 = vmul.f32 %v170, %v264
    %v281 = vmul.f32 %v173, %v265
    %v282 = vmul.f32 %v178, %v266
    %v283 = vmul.f32 %v181, %v267
    %v284 = vmul.f32 %v170, %v268
    %v285 = vmul.f32 %v173, %v269
    %v286 = vmul.f32 %v178, %v270
    %v287 = vmul.f32 %v181, %v271
    %v288 = vpack.c.bf16 %v273, %v272
    %v289 = vpack.c.bf16 %v275, %v274
    %v290 = vpack.c.bf16 %v277, %v276
    %v291 = vpack.c.bf16 %v279, %v278
    %v292 = vpack.c.bf16 %v281, %v280
    %v293 = vpack.c.bf16 %v283, %v282
    %v294 = vpack.c.bf16 %v285, %v284
    %v295 = vpack.c.bf16 %v287, %v286
    %v296 = vpack.c.bf16 %v245, %v242
    %v297 = vpack.c.bf16 %v253, %v250
    %v299 = vsel %vm50, %v288, 0
    %v302 = vsel %vm50, %v289, 0
    %v305 = vsel %vm50, %v290, 0
    %v308 = vsel %vm50, %v291, 0
    %v311 = vsel %vm50, %v292, 0
    %v314 = vsel %vm50, %v293, 0
    %v317 = vsel %vm50, %v294, 0
    %v320 = vsel %vm50, %v295, 0
    %v323 = vsel %vm50, %v296, 0
    %v326 = vsel %vm50, %v297, 0
    %328 = vmatprep.subr.bf16.mxu0 0
    %329 = vmatpush1.bf16.xpose.msra.mxu0 %v323
    %330 = vmatprep.subr.bf16.mxu0 0
    %331 = vmatpush1.bf16.xpose.msra.mxu0 %v326
    %332 = vmatprep.subr.bf16.mxu0 0
    %333 = vmatpush1.bf16.xpose.msra.mxu0 0
    %334 = vmatprep.subr.bf16.mxu0 0
    %335 = vmatpush1.bf16.xpose.msra.mxu0 0
    %336 = vmatprep.subr.bf16.mxu0 0
    %337 = vmatpush1.bf16.xpose.msra.mxu0 0
    %338 = vmatprep.subr.bf16.mxu0 0
    %339 = vmatpush1.bf16.xpose.msra.mxu0 0
    %340 = vmatprep.subr.bf16.mxu0 0
    %341 = vmatpush1.bf16.xpose.msra.mxu0 0
    %342 = vmatprep.subr.bf16.mxu0 0
    %343 = vmatpush1.bf16.xpose.msra.mxu0 0
    %344 = vmatprep.subr.bf16.mxu0 0
    %345 = vmatpush1.bf16.xpose.msra.mxu0 0
    %346 = vmatprep.subr.bf16.mxu0 0
    %347 = vmatpush1.bf16.xpose.msra.mxu0 0
    %348 = vmatprep.subr.bf16.mxu0 0
    %349 = vmatpush1.bf16.xpose.msra.mxu0 0
    %350 = vmatprep.subr.bf16.mxu0 0
    %351 = vmatpush1.bf16.xpose.msra.mxu0 0
    %352 = vmatprep.subr.bf16.mxu0 0
    %353 = vmatpush1.bf16.xpose.msra.mxu0 0
    %354 = vmatprep.subr.bf16.mxu0 0
    %355 = vmatpush1.bf16.xpose.msra.mxu0 0
    %356 = vmatprep.subr.bf16.mxu0 0
    %357 = vmatpush1.bf16.xpose.msra.mxu0 0
    %358 = vmatprep.subr.bf16.mxu0 0
    %359 = vmatpush1.bf16.xpose.msra.mxu0 0
    %360 = vmatprep.mubr.bf16.mxu0 0
    %361 = vmatmul.mubr.bf16.gmra.mrb[0].mxu0 %v299
    %v362 = vpop.f32.mrb[0].mxu0
    %v363 = vadd.f32 0.0, %v362
    %v364 = vpop.f32.mrb[0].mxu0
    %v365 = vpop.f32.mrb[0].mxu0
    %v366 = vadd.f32 0.0, %v365
    %v367 = vpop.f32.mrb[0].mxu0
    %368 = vmatprep.mubr.bf16.mxu0 0
    %369 = vmatmul.mubr.bf16.gmra.mrb[0].mxu0 %v302
    %v370 = vpop.f32.mrb[0].mxu0
    %v371 = vadd.f32 0.0, %v370
    %v372 = vpop.f32.mrb[0].mxu0
    %v373 = vpop.f32.mrb[0].mxu0
    %v374 = vadd.f32 0.0, %v373
    %v375 = vpop.f32.mrb[0].mxu0
    %376 = vmatprep.mubr.bf16.mxu0 0
    %377 = vmatmul.mubr.bf16.gmra.mrb[0].mxu0 %v305
    %v378 = vpop.f32.mrb[0].mxu0
    %v379 = vadd.f32 0.0, %v378
    %v380 = vpop.f32.mrb[0].mxu0
    %v381 = vpop.f32.mrb[0].mxu0
    %v382 = vadd.f32 0.0, %v381
    %v383 = vpop.f32.mrb[0].mxu0
    %384 = vmatprep.mubr.bf16.mxu0 0
    %385 = vmatmul.mubr.bf16.gmra.mrb[0].mxu0 %v308
    %v386 = vpop.f32.mrb[0].mxu0
    %v387 = vadd.f32 0.0, %v386
    %v388 = vpop.f32.mrb[0].mxu0
    %v389 = vpop.f32.mrb[0].mxu0
    %v390 = vadd.f32 0.0, %v389
    %v391 = vpop.f32.mrb[0].mxu0
    %392 = vmatprep.mubr.bf16.mxu0 0
    %393 = vmatmul.mubr.bf16.gmra.mrb[0].mxu0 %v311
    %v394 = vpop.f32.mrb[0].mxu0
    %v395 = vadd.f32 0.0, %v394
    %v396 = vpop.f32.mrb[0].mxu0
    %v397 = vpop.f32.mrb[0].mxu0
    %v398 = vadd.f32 0.0, %v397
    %v399 = vpop.f32.mrb[0].mxu0
    %400 = vmatprep.mubr.bf16.mxu0 0
    %401 = vmatmul.mubr.bf16.gmra.mrb[0].mxu0 %v314
    %v402 = vpop.f32.mrb[0].mxu0
    %v403 = vadd.f32 0.0, %v402
    %v404 = vpop.f32.mrb[0].mxu0
    %v405 = vpop.f32.mrb[0].mxu0
    %v406 = vadd.f32 0.0, %v405
    %v407 = vpop.f32.mrb[0].mxu0
    %408 = vmatprep.mubr.bf16.mxu0 0
    %409 = vmatmul.mubr.bf16.gmra.mrb[0].mxu0 %v317
    %v410 = vpop.f32.mrb[0].mxu0
    %v411 = vadd.f32 0.0, %v410
    %v412 = vpop.f32.mrb[0].mxu0
    %v413 = vpop.f32.mrb[0].mxu0
    %v414 = vadd.f32 0.0, %v413
    %v415 = vpop.f32.mrb[0].mxu0
    %416 = vmatprep.mubr.bf16.mxu0 0
    %417 = vmatmul.mubr.bf16.gmra.mrb[0].mxu0 %v320
    %v418 = vpop.f32.mrb[0].mxu0
    %v419 = vadd.f32 0.0, %v418
    %v420 = vpop.f32.mrb[0].mxu0
    %v421 = vpop.f32.mrb[0].mxu0
    %v422 = vadd.f32 0.0, %v421
    %v423 = vpop.f32.mrb[0].mxu0
    %424 = vdwg.mxu0
    %v425 = vld [vmem:[%s1] sm:$0xff]
    %v426 = vld [vmem:[%s1 + $0x8] sm:$0xff]
    %v427 = vld [vmem:[%s1 + $0x10] sm:$0xff]
    %v428 = vld [vmem:[%s1 + $0x18] sm:$0xff]
    %v429 = vadd.f32 %v363, %v425
    %v430 = vadd.f32 %v366, %v426
    %v431 = vadd.f32 %v371, %v427
    %v432 = vadd.f32 %v374, %v428
    %v433 = vadd.f32 %v379, %v425
    %v434 = vadd.f32 %v382, %v426
    %v435 = vadd.f32 %v387, %v427
    %v436 = vadd.f32 %v390, %v428
    %v437 = vadd.f32 %v395, %v425
    %v438 = vadd.f32 %v398, %v426
    %v439 = vadd.f32 %v403, %v427
    %v440 = vadd.f32 %v406, %v428
    %v441 = vadd.f32 %v411, %v425
    %v442 = vadd.f32 %v414, %v426
    %v443 = vadd.f32 %v419, %v427
    %v444 = vadd.f32 %v422, %v428
    %v445 = vsel %vm50, %v429, -inf
    %446 = vmax.xlane.f32.xlu0 %v445
    %v447 = vpop.xlane.xlu0 %446
    %v448 = vsel %vm50, %v430, -inf
    %449 = vmax.xlane.f32.xlu0 %v448
    %v450 = vpop.xlane.xlu0 %449
    %v451 = vsel %vm50, %v431, -inf
    %452 = vmax.xlane.f32.xlu0 %v451
    %v453 = vpop.xlane.xlu0 %452
    %v454 = vsel %vm50, %v432, -inf
    %455 = vmax.xlane.f32.xlu0 %v454
    %v456 = vpop.xlane.xlu0 %455
    %v457 = vsel %vm50, %v433, -inf
    %458 = vmax.xlane.f32.xlu0 %v457
    %v459 = vpop.xlane.xlu0 %458
    %v460 = vsel %vm50, %v434, -inf
    %461 = vmax.xlane.f32.xlu0 %v460
    %v462 = vpop.xlane.xlu0 %461
    %v463 = vsel %vm50, %v435, -inf
    %464 = vmax.xlane.f32.xlu0 %v463
    %v465 = vpop.xlane.xlu0 %464
    %v466 = vsel %vm50, %v436, -inf
    %467 = vmax.xlane.f32.xlu0 %v466
    %v468 = vpop.xlane.xlu0 %467
    %v469 = vsel %vm50, %v437, -inf
    %470 = vmax.xlane.f32.xlu0 %v469
    %v471 = vpop.xlane.xlu0 %470
    %v472 = vsel %vm50, %v438, -inf
    %473 = vmax.xlane.f32.xlu0 %v472
    %v474 = vpop.xlane.xlu0 %473
    %v475 = vsel %vm50, %v439, -inf
    %476 = vmax.xlane.f32.xlu0 %v475
    %v477 = vpop.xlane.xlu0 %476
    %v478 = vsel %vm50, %v440, -inf
    %479 = vmax.xlane.f32.xlu0 %v478
    %v480 = vpop.xlane.xlu0 %479
    %v481 = vsel %vm50, %v441, -inf
    %482 = vmax.xlane.f32.xlu0 %v481
    %v483 = vpop.xlane.xlu0 %482
    %v484 = vsel %vm50, %v442, -inf
    %485 = vmax.xlane.f32.xlu0 %v484
    %v486 = vpop.xlane.xlu0 %485
    %v487 = vsel %vm50, %v443, -inf
    %488 = vmax.xlane.f32.xlu0 %v487
    %v489 = vpop.xlane.xlu0 %488
    %v490 = vsel %vm50, %v444, -inf
    %491 = vmax.xlane.f32.xlu0 %v490
    %v492 = vpop.xlane.xlu0 %491
    %v493 = vsub.f32 %v429, %v447
    %v494 = vsub.f32 %v430, %v450
    %v495 = vsub.f32 %v431, %v453
    %v496 = vsub.f32 %v432, %v456
    %v497 = vsub.f32 %v433, %v459
    %v498 = vsub.f32 %v434, %v462
    %v499 = vsub.f32 %v435, %v465
    %v500 = vsub.f32 %v436, %v468
    %v501 = vsub.f32 %v437, %v471
    %v502 = vsub.f32 %v438, %v474
    %v503 = vsub.f32 %v439, %v477
    %v504 = vsub.f32 %v440, %v480
    %v505 = vsub.f32 %v441, %v483
    %v506 = vsub.f32 %v442, %v486
    %v507 = vsub.f32 %v443, %v489
    %v508 = vsub.f32 %v444, %v492
    %v509 = vmul.f32 %v493, 1.442695
    %v510 = vpow.pop %v509
    %v511 = vmul.f32 %v494, 1.442695
    %v512 = vpow.pop %v511
    %v513 = vmul.f32 %v495, 1.442695
    %v514 = vpow.pop %v513
    %v515 = vmul.f32 %v496, 1.442695
    %v516 = vpow.pop %v515
    %v517 = vmul.f32 %v497, 1.442695
    %v518 = vpow.pop %v517
    %v519 = vmul.f32 %v498, 1.442695
    %v520 = vpow.pop %v519
    %v521 = vmul.f32 %v499, 1.442695
    %v522 = vpow.pop %v521
    %v523 = vmul.f32 %v500, 1.442695
    %v524 = vpow.pop %v523
    %v525 = vmul.f32 %v501, 1.442695
    %v526 = vpow.pop %v525
    %v527 = vmul.f32 %v502, 1.442695
    %v528 = vpow.pop %v527
    %v529 = vmul.f32 %v503, 1.442695
    %v530 = vpow.pop %v529
    %v531 = vmul.f32 %v504, 1.442695
    %v532 = vpow.pop %v531
    %v533 = vmul.f32 %v505, 1.442695
    %v534 = vpow.pop %v533
    %v535 = vmul.f32 %v506, 1.442695
    %v536 = vpow.pop %v535
    %v537 = vmul.f32 %v507, 1.442695
    %v538 = vpow.pop %v537
    %v539 = vmul.f32 %v508, 1.442695
    %v540 = vpow.pop %v539
    %v541 = vsel %vm50, %v510, 0.0
    %542 = vadd.xlane.f32.xlu0 %v541
    %v543 = vpop.xlane.xlu0 %542
    %v544 = vsel %vm50, %v512, 0.0
    %545 = vadd.xlane.f32.xlu0 %v544
    %v546 = vpop.xlane.xlu0 %545
    %v547 = vsel %vm50, %v514, 0.0
    %548 = vadd.xlane.f32.xlu0 %v547
    %v549 = vpop.xlane.xlu0 %548
    %v550 = vsel %vm50, %v516, 0.0
    %551 = vadd.xlane.f32.xlu0 %v550
    %v552 = vpop.xlane.xlu0 %551
    %v553 = vsel %vm50, %v518, 0.0
    %554 = vadd.xlane.f32.xlu0 %v553
    %v555 = vpop.xlane.xlu0 %554
    %v556 = vsel %vm50, %v520, 0.0
    %557 = vadd.xlane.f32.xlu0 %v556
    %v558 = vpop.xlane.xlu0 %557
    %v559 = vsel %vm50, %v522, 0.0
    %560 = vadd.xlane.f32.xlu0 %v559
    %v561 = vpop.xlane.xlu0 %560
    %v562 = vsel %vm50, %v524, 0.0
    %563 = vadd.xlane.f32.xlu0 %v562
    %v564 = vpop.xlane.xlu0 %563
    %v565 = vsel %vm50, %v526, 0.0
    %566 = vadd.xlane.f32.xlu0 %v565
    %v567 = vpop.xlane.xlu0 %566
    %v568 = vsel %vm50, %v528, 0.0
    %569 = vadd.xlane.f32.xlu0 %v568
    %v570 = vpop.xlane.xlu0 %569
    %v571 = vsel %vm50, %v530, 0.0
    %572 = vadd.xlane.f32.xlu0 %v571
    %v573 = vpop.xlane.xlu0 %572
    %v574 = vsel %vm50, %v532, 0.0
    %575 = vadd.xlane.f32.xlu0 %v574
    %v576 = vpop.xlane.xlu0 %575
    %v577 = vsel %vm50, %v534, 0.0
    %578 = vadd.xlane.f32.xlu0 %v577
    %v579 = vpop.xlane.xlu0 %578
    %v580 = vsel %vm50, %v536, 0.0
    %581 = vadd.xlane.f32.xlu0 %v580
    %v582 = vpop.xlane.xlu0 %581
    %v583 = vsel %vm50, %v538, 0.0
    %584 = vadd.xlane.f32.xlu0 %v583
    %v585 = vpop.xlane.xlu0 %584
    %v586 = vsel %vm50, %v540, 0.0
    %587 = vadd.xlane.f32.xlu0 %v586
    %v588 = vpop.xlane.xlu0 %587
    %v589 = vrcp.pop %v543
    %v590 = vrcp.pop %v546
    %v591 = vrcp.pop %v549
    %v592 = vrcp.pop %v552
    %v593 = vrcp.pop %v555
    %v594 = vrcp.pop %v558
    %v595 = vrcp.pop %v561
    %v596 = vrcp.pop %v564
    %v597 = vrcp.pop %v567
    %v598 = vrcp.pop %v570
    %v599 = vrcp.pop %v573
    %v600 = vrcp.pop %v576
    %v601 = vrcp.pop %v579
    %v602 = vrcp.pop %v582
    %v603 = vrcp.pop %v585
    %v604 = vrcp.pop %v588
    %v605 = vmul.f32 %v510, %v589
    %v606 = vmul.f32 %v512, %v590
    %v607 = vmul.f32 %v514, %v591
    %v608 = vmul.f32 %v516, %v592
    %v609 = vmul.f32 %v518, %v593
    %v610 = vmul.f32 %v520, %v594
    %v611 = vmul.f32 %v522, %v595
    %v612 = vmul.f32 %v524, %v596
    %v613 = vmul.f32 %v526, %v597
    %v614 = vmul.f32 %v528, %v598
    %v615 = vmul.f32 %v530, %v599
    %v616 = vmul.f32 %v532, %v600
    %v617 = vmul.f32 %v534, %v601
    %v618 = vmul.f32 %v536, %v602
    %v619 = vmul.f32 %v538, %v603
    %v620 = vmul.f32 %v540, %v604
    %v621 = vpack.c.bf16 %v606, %v605
    %v622 = vpack.c.bf16 %v608, %v607
    %v623 = vpack.c.bf16 %v610, %v609
    %v624 = vpack.c.bf16 %v612, %v611
    %v625 = vpack.c.bf16 %v614, %v613
    %v626 = vpack.c.bf16 %v616, %v615
    %v627 = vpack.c.bf16 %v618, %v617
    %v628 = vpack.c.bf16 %v620, %v619
    %v630 = vsel %vm50, %v621, 0
    %v633 = vsel %vm50, %v622, 0
    %v636 = vsel %vm50, %v623, 0
    %v639 = vsel %vm50, %v624, 0
    %v642 = vsel %vm50, %v625, 0
    %v645 = vsel %vm50, %v626, 0
    %v648 = vsel %vm50, %v627, 0
    %v651 = vsel %vm50, %v628, 0
    %653 = vmatprep.subr.bf16.mxu0 0
    %654 = vmatpush1.bf16.msra.mxu0 %v104
    %655 = vmatprep.subr.bf16.mxu0 0
    %656 = vmatpush1.bf16.msra.mxu0 %v105
    %657 = vmatprep.subr.bf16.mxu0 0
    %658 = vmatpush1.bf16.msra.mxu0 0
    %659 = vmatprep.subr.bf16.mxu0 0
    %660 = vmatpush1.bf16.msra.mxu0 0
    %661 = vmatprep.subr.bf16.mxu0 0
    %662 = vmatpush1.bf16.msra.mxu0 0
    %663 = vmatprep.subr.bf16.mxu0 0
    %664 = vmatpush1.bf16.msra.mxu0 0
    %665 = vmatprep.subr.bf16.mxu0 0
    %666 = vmatpush1.bf16.msra.mxu0 0
    %667 = vmatprep.subr.bf16.mxu0 0
    %668 = vmatpush1.bf16.msra.mxu0 0
    %669 = vmatprep.subr.bf16.mxu0 0
    %670 = vmatpush1.bf16.msra.mxu0 0
    %671 = vmatprep.subr.bf16.mxu0 0
    %672 = vmatpush1.bf16.msra.mxu0 0
    %673 = vmatprep.subr.bf16.mxu0 0
    %674 = vmatpush1.bf16.msra.mxu0 0
    %675 = vmatprep.subr.bf16.mxu0 0
    %676 = vmatpush1.bf16.msra.mxu0 0
    %677 = vmatprep.subr.bf16.mxu0 0
    %678 = vmatpush1.bf16.msra.mxu0 0
    %679 = vmatprep.subr.bf16.mxu0 0
    %680 = vmatpush1.bf16.msra.mxu0 0
    %681 = vmatprep.subr.bf16.mxu0 0
    %682 = vmatpush1.bf16.msra.mxu0 0
    %683 = vmatprep.subr.bf16.mxu0 0
    %684 = vmatpush1.bf16.msra.mxu0 0
    %685 = vmatprep.mubr.bf16.mxu0 0
    %686 = vmatmul.mubr.bf16.gmra.mrb[0].mxu0 %v630
    %v687 = vpop.f32.mrb[0].mxu0
    %v688 = vadd.f32 0.0, %v687
    %v689 = vpop.f32.mrb[0].mxu0
    %v690 = vpop.f32.mrb[0].mxu0
    %v691 = vadd.f32 0.0, %v690
    %v692 = vpop.f32.mrb[0].mxu0
    %693 = vmatprep.mubr.bf16.mxu0 0
    %694 = vmatmul.mubr.bf16.gmra.mrb[0].mxu0 %v633
    %v695 = vpop.f32.mrb[0].mxu0
    %v696 = vadd.f32 0.0, %v695
    %v697 = vpop.f32.mrb[0].mxu0
    %v698 = vpop.f32.mrb[0].mxu0
    %v699 = vadd.f32 0.0, %v698
    %v700 = vpop.f32.mrb[0].mxu0
    %701 = vmatprep.mubr.bf16.mxu0 0
    %702 = vmatmul.mubr.bf16.gmra.mrb[0].mxu0 %v636
    %v703 = vpop.f32.mrb[0].mxu0
    %v704 = vadd.f32 0.0, %v703
    %v705 = vpop.f32.mrb[0].mxu0
    %v706 = vpop.f32.mrb[0].mxu0
    %v707 = vadd.f32 0.0, %v706
    %v708 = vpop.f32.mrb[0].mxu0
    %709 = vmatprep.mubr.bf16.mxu0 0
    %710 = vmatmul.mubr.bf16.gmra.mrb[0].mxu0 %v639
    %v711 = vpop.f32.mrb[0].mxu0
    %v712 = vadd.f32 0.0, %v711
    %v713 = vpop.f32.mrb[0].mxu0
    %v714 = vpop.f32.mrb[0].mxu0
    %v715 = vadd.f32 0.0, %v714
    %v716 = vpop.f32.mrb[0].mxu0
    %717 = vmatprep.mubr.bf16.mxu0 0
    %718 = vmatmul.mubr.bf16.gmra.mrb[0].mxu0 %v642
    %v719 = vpop.f32.mrb[0].mxu0
    %v720 = vadd.f32 0.0, %v719
    %v721 = vpop.f32.mrb[0].mxu0
    %v722 = vpop.f32.mrb[0].mxu0
    %v723 = vadd.f32 0.0, %v722
    %v724 = vpop.f32.mrb[0].mxu0
    %725 = vmatprep.mubr.bf16.mxu0 0
    %726 = vmatmul.mubr.bf16.gmra.mrb[0].mxu0 %v645
    %v727 = vpop.f32.mrb[0].mxu0
    %v728 = vadd.f32 0.0, %v727
    %v729 = vpop.f32.mrb[0].mxu0
    %v730 = vpop.f32.mrb[0].mxu0
    %v731 = vadd.f32 0.0, %v730
    %v732 = vpop.f32.mrb[0].mxu0
    %733 = vmatprep.mubr.bf16.mxu0 0
    %734 = vmatmul.mubr.bf16.gmra.mrb[0].mxu0 %v648
    %v735 = vpop.f32.mrb[0].mxu0
    %v736 = vadd.f32 0.0, %v735
    %v737 = vpop.f32.mrb[0].mxu0
    %v738 = vpop.f32.mrb[0].mxu0
    %v739 = vadd.f32 0.0, %v738
    %v740 = vpop.f32.mrb[0].mxu0
    %741 = vmatprep.mubr.bf16.mxu0 0
    %742 = vmatmul.mubr.bf16.gmra.mrb[0].mxu0 %v651
    %v743 = vpop.f32.mrb[0].mxu0
    %v744 = vadd.f32 0.0, %v743
    %v745 = vpop.f32.mrb[0].mxu0
    %v746 = vpop.f32.mrb[0].mxu0
    %v747 = vadd.f32 0.0, %v746
    %v748 = vpop.f32.mrb[0].mxu0
    %749 = vdwg.mxu0
    %v750 = vpack.c.bf16 %v691, %v688
    %v751 = vpack.c.bf16 %v699, %v696
    %v752 = vpack.c.bf16 %v707, %v704
    %v753 = vpack.c.bf16 %v715, %v712
    %v754 = vpack.c.bf16 %v723, %v720
    %v755 = vpack.c.bf16 %v731, %v728
    %v756 = vpack.c.bf16 %v739, %v736
    %v757 = vpack.c.bf16 %v747, %v744
    %v758 = vld [vmem:[%s7] sm:$0xf]
    %v759 = vld [vmem:[%s7 + $0x4] sm:$0xf]
    %v760 = vld [vmem:[%s7 + $0x8] sm:$0xf]
    %v761 = vld [vmem:[%s7 + $0xc] sm:$0xf]
    %v762 = vld [vmem:[%s7 + $0x10] sm:$0xf]
    %v763 = vld [vmem:[%s7 + $0x14] sm:$0xf]
    %v764 = vld [vmem:[%s7 + $0x18] sm:$0xf]
    %v765 = vld [vmem:[%s7 + $0x1c] sm:$0xf]
    %v766 = vld [vmem:[%s7 + $0x20] sm:$0xf]
    %v767 = vld [vmem:[%s7 + $0x24] sm:$0xf]
    %v768 = vld [vmem:[%s7 + $0x28] sm:$0xf]
    %v769 = vld [vmem:[%s7 + $0x2c] sm:$0xf]
    %v770 = vld [vmem:[%s7 + $0x30] sm:$0xf]
    %v771 = vld [vmem:[%s7 + $0x34] sm:$0xf]
    %v772 = vld [vmem:[%s7 + $0x38] sm:$0xf]
    %v773 = vld [vmem:[%s7 + $0x3c] sm:$0xf]
    %v778 = vunpack.c.l.b16 %v758
    %v779 = vunpack.c.l.b16 %v759
    %v780 = vunpack.c.l.b16 %v760
    %v781 = vunpack.c.l.b16 %v761
    %v782 = vpack.c.b16 %v779, %v778
    %v783 = vpack.c.b16 %v781, %v780
    %v787 = vsel %vm50, %v750, 0
    %v790 = vsel %vm50, %v751, 0
    %792 = vmatprep.subr.bf16.mxu0 0
    %793 = vmatpush1.bf16.msra.mxu0 %v782
    %794 = vmatprep.subr.bf16.mxu0 0
    %795 = vmatpush1.bf16.msra.mxu0 %v783
    %796 = vmatprep.subr.bf16.mxu0 0
    %797 = vmatpush1.bf16.msra.mxu0 0
    %798 = vmatprep.subr.bf16.mxu0 0
    %799 = vmatpush1.bf16.msra.mxu0 0
    %800 = vmatprep.subr.bf16.mxu0 0
    %801 = vmatpush1.bf16.msra.mxu0 0
    %802 = vmatprep.subr.bf16.mxu0 0
    %803 = vmatpush1.bf16.msra.mxu0 0
    %804 = vmatprep.subr.bf16.mxu0 0
    %805 = vmatpush1.bf16.msra.mxu0 0
    %806 = vmatprep.subr.bf16.mxu0 0
    %807 = vmatpush1.bf16.msra.mxu0 0
    %808 = vmatprep.subr.bf16.mxu0 0
    %809 = vmatpush1.bf16.msra.mxu0 0
    %810 = vmatprep.subr.bf16.mxu0 0
    %811 = vmatpush1.bf16.msra.mxu0 0
    %812 = vmatprep.subr.bf16.mxu0 0
    %813 = vmatpush1.bf16.msra.mxu0 0
    %814 = vmatprep.subr.bf16.mxu0 0
    %815 = vmatpush1.bf16.msra.mxu0 0
    %816 = vmatprep.subr.bf16.mxu0 0
    %817 = vmatpush1.bf16.msra.mxu0 0
    %818 = vmatprep.subr.bf16.mxu0 0
    %819 = vmatpush1.bf16.msra.mxu0 0
    %820 = vmatprep.subr.bf16.mxu0 0
    %821 = vmatpush1.bf16.msra.mxu0 0
    %822 = vmatprep.subr.bf16.mxu0 0
    %823 = vmatpush1.bf16.msra.mxu0 0
    %824 = vmatprep.mubr.bf16.mxu0 0
    %825 = vmatmul.mubr.bf16.gmra.mrb[0].mxu0 %v787
    %v826 = vpop.f32.mrb[0].mxu0
    %v827 = vadd.f32 0.0, %v826
    %v828 = vpop.f32.mrb[0].mxu0
    %v829 = vpop.f32.mrb[0].mxu0
    %v830 = vadd.f32 0.0, %v829
    %v831 = vpop.f32.mrb[0].mxu0
    %832 = vmatprep.mubr.bf16.mxu0 0
    %833 = vmatmul.mubr.bf16.gmra.mrb[0].mxu0 %v790
    %v834 = vpop.f32.mrb[0].mxu0
    %v835 = vadd.f32 0.0, %v834
    %v836 = vpop.f32.mrb[0].mxu0
    %v837 = vpop.f32.mrb[0].mxu0
    %v838 = vadd.f32 0.0, %v837
    %v839 = vpop.f32.mrb[0].mxu0
    %840 = vdwg.mxu0
    %v845 = vunpack.c.l.b16 %v762
    %v846 = vunpack.c.l.b16 %v763
    %v847 = vunpack.c.l.b16 %v764
    %v848 = vunpack.c.l.b16 %v765
    %v849 = vpack.c.b16 %v846, %v845
    %v850 = vpack.c.b16 %v848, %v847
    %v854 = vsel %vm50, %v752, 0
    %v857 = vsel %vm50, %v753, 0
    %859 = vmatprep.subr.bf16.mxu0 0
    %860 = vmatpush1.bf16.msra.mxu0 %v849
    %861 = vmatprep.subr.bf16.mxu0 0
    %862 = vmatpush1.bf16.msra.mxu0 %v850
    %863 = vmatprep.subr.bf16.mxu0 0
    %864 = vmatpush1.bf16.msra.mxu0 0
    %865 = vmatprep.subr.bf16.mxu0 0
    %866 = vmatpush1.bf16.msra.mxu0 0
    %867 = vmatprep.subr.bf16.mxu0 0
    %868 = vmatpush1.bf16.msra.mxu0 0
    %869 = vmatprep.subr.bf16.mxu0 0
    %870 = vmatpush1.bf16.msra.mxu0 0
    %871 = vmatprep.subr.bf16.mxu0 0
    %872 = vmatpush1.bf16.msra.mxu0 0
    %873 = vmatprep.subr.bf16.mxu0 0
    %874 = vmatpush1.bf16.msra.mxu0 0
    %875 = vmatprep.subr.bf16.mxu0 0
    %876 = vmatpush1.bf16.msra.mxu0 0
    %877 = vmatprep.subr.bf16.mxu0 0
    %878 = vmatpush1.bf16.msra.mxu0 0
    %879 = vmatprep.subr.bf16.mxu0 0
    %880 = vmatpush1.bf16.msra.mxu0 0
    %881 = vmatprep.subr.bf16.mxu0 0
    %882 = vmatpush1.bf16.msra.mxu0 0
    %883 = vmatprep.subr.bf16.mxu0 0
    %884 = vmatpush1.bf16.msra.mxu0 0
    %885 = vmatprep.subr.bf16.mxu0 0
    %886 = vmatpush1.bf16.msra.mxu0 0
    %887 = vmatprep.subr.bf16.mxu0 0
    %888 = vmatpush1.bf16.msra.mxu0 0
    %889 = vmatprep.subr.bf16.mxu0 0
    %890 = vmatpush1.bf16.msra.mxu0 0
    %891 = vmatprep.mubr.bf16.mxu0 0
    %892 = vmatmul.mubr.bf16.gmra.mrb[0].mxu0 %v854
    %v893 = vpop.f32.mrb[0].mxu0
    %v894 = vadd.f32 0.0, %v893
    %v895 = vpop.f32.mrb[0].mxu0
    %v896 = vpop.f32.mrb[0].mxu0
    %v897 = vadd.f32 0.0, %v896
    %v898 = vpop.f32.mrb[0].mxu0
    %899 = vmatprep.mubr.bf16.mxu0 0
    %900 = vmatmul.mubr.bf16.gmra.mrb[0].mxu0 %v857
    %v901 = vpop.f32.mrb[0].mxu0
    %v902 = vadd.f32 0.0, %v901
    %v903 = vpop.f32.mrb[0].mxu0
    %v904 = vpop.f32.mrb[0].mxu0
    %v905 = vadd.f32 0.0, %v904
    %v906 = vpop.f32.mrb[0].mxu0
    %907 = vdwg.mxu0
    %v912 = vunpack.c.l.b16 %v766
    %v913 = vunpack.c.l.b16 %v767
    %v914 = vunpack.c.l.b16 %v768
    %v915 = vunpack.c.l.b16 %v769
    %v916 = vpack.c.b16 %v913, %v912
    %v917 = vpack.c.b16 %v915, %v914
    %v921 = vsel %vm50, %v754, 0
    %v924 = vsel %vm50, %v755, 0
    %926 = vmatprep.subr.bf16.mxu0 0
    %927 = vmatpush1.bf16.msra.mxu0 %v916
    %928 = vmatprep.subr.bf16.mxu0 0
    %929 = vmatpush1.bf16.msra.mxu0 %v917
    %930 = vmatprep.subr.bf16.mxu0 0
    %931 = vmatpush1.bf16.msra.mxu0 0
    %932 = vmatprep.subr.bf16.mxu0 0
    %933 = vmatpush1.bf16.msra.mxu0 0
    %934 = vmatprep.subr.bf16.mxu0 0
    %935 = vmatpush1.bf16.msra.mxu0 0
    %936 = vmatprep.subr.bf16.mxu0 0
    %937 = vmatpush1.bf16.msra.mxu0 0
    %938 = vmatprep.subr.bf16.mxu0 0
    %939 = vmatpush1.bf16.msra.mxu0 0
    %940 = vmatprep.subr.bf16.mxu0 0
    %941 = vmatpush1.bf16.msra.mxu0 0
    %942 = vmatprep.subr.bf16.mxu0 0
    %943 = vmatpush1.bf16.msra.mxu0 0
    %944 = vmatprep.subr.bf16.mxu0 0
    %945 = vmatpush1.bf16.msra.mxu0 0
    %946 = vmatprep.subr.bf16.mxu0 0
    %947 = vmatpush1.bf16.msra.mxu0 0
    %948 = vmatprep.subr.bf16.mxu0 0
    %949 = vmatpush1.bf16.msra.mxu0 0
    %950 = vmatprep.subr.bf16.mxu0 0
    %951 = vmatpush1.bf16.msra.mxu0 0
    %952 = vmatprep.subr.bf16.mxu0 0
    %953 = vmatpush1.bf16.msra.mxu0 0
    %954 = vmatprep.subr.bf16.mxu0 0
    %955 = vmatpush1.bf16.msra.mxu0 0
    %956 = vmatprep.subr.bf16.mxu0 0
    %957 = vmatpush1.bf16.msra.mxu0 0
    %958 = vmatprep.mubr.bf16.mxu0 0
    %959 = vmatmul.mubr.bf16.gmra.mrb[0].mxu0 %v921
    %v960 = vpop.f32.mrb[0].mxu0
    %v961 = vadd.f32 0.0, %v960
    %v962 = vpop.f32.mrb[0].mxu0
    %v963 = vpop.f32.mrb[0].mxu0
    %v964 = vadd.f32 0.0, %v963
    %v965 = vpop.f32.mrb[0].mxu0
    %966 = vmatprep.mubr.bf16.mxu0 0
    %967 = vmatmul.mubr.bf16.gmra.mrb[0].mxu0 %v924
    %v968 = vpop.f32.mrb[0].mxu0
    %v969 = vadd.f32 0.0, %v968
    %v970 = vpop.f32.mrb[0].mxu0
    %v971 = vpop.f32.mrb[0].mxu0
    %v972 = vadd.f32 0.0, %v971
    %v973 = vpop.f32.mrb[0].mxu0
    %974 = vdwg.mxu0
    %v979 = vunpack.c.l.b16 %v770
    %v980 = vunpack.c.l.b16 %v771
    %v981 = vunpack.c.l.b16 %v772
    %v982 = vunpack.c.l.b16 %v773
    %v983 = vpack.c.b16 %v980, %v979
    %v984 = vpack.c.b16 %v982, %v981
    %v988 = vsel %vm50, %v756, 0
    %v991 = vsel %vm50, %v757, 0
    %993 = vmatprep.subr.bf16.mxu0 0
    %994 = vmatpush1.bf16.msra.mxu0 %v983
    %995 = vmatprep.subr.bf16.mxu0 0
    %996 = vmatpush1.bf16.msra.mxu0 %v984
    %997 = vmatprep.subr.bf16.mxu0 0
    %998 = vmatpush1.bf16.msra.mxu0 0
    %999 = vmatprep.subr.bf16.mxu0 0
    %1000 = vmatpush1.bf16.msra.mxu0 0
    %1001 = vmatprep.subr.bf16.mxu0 0
    %1002 = vmatpush1.bf16.msra.mxu0 0
    %1003 = vmatprep.subr.bf16.mxu0 0
    %1004 = vmatpush1.bf16.msra.mxu0 0
    %1005 = vmatprep.subr.bf16.mxu0 0
    %1006 = vmatpush1.bf16.msra.mxu0 0
    %1007 = vmatprep.subr.bf16.mxu0 0
    %1008 = vmatpush1.bf16.msra.mxu0 0
    %1009 = vmatprep.subr.bf16.mxu0 0
    %1010 = vmatpush1.bf16.msra.mxu0 0
    %1011 = vmatprep.subr.bf16.mxu0 0
    %1012 = vmatpush1.bf16.msra.mxu0 0
    %1013 = vmatprep.subr.bf16.mxu0 0
    %1014 = vmatpush1.bf16.msra.mxu0 0
    %1015 = vmatprep.subr.bf16.mxu0 0
    %1016 = vmatpush1.bf16.msra.mxu0 0
    %1017 = vmatprep.subr.bf16.mxu0 0
    %1018 = vmatpush1.bf16.msra.mxu0 0
    %1019 = vmatprep.subr.bf16.mxu0 0
    %1020 = vmatpush1.bf16.msra.mxu0 0
    %1021 = vmatprep.subr.bf16.mxu0 0
    %1022 = vmatpush1.bf16.msra.mxu0 0
    %1023 = vmatprep.subr.bf16.mxu0 0
    %1024 = vmatpush1.bf16.msra.mxu0 0
    %1025 = vmatprep.mubr.bf16.mxu0 0
    %1026 = vmatmul.mubr.bf16.gmra.mrb[0].mxu0 %v988
    %v1027 = vpop.f32.mrb[0].mxu0
    %v1028 = vadd.f32 0.0, %v1027
    %v1029 = vpop.f32.mrb[0].mxu0
    %v1030 = vpop.f32.mrb[0].mxu0
    %v1031 = vadd.f32 0.0, %v1030
    %v1032 = vpop.f32.mrb[0].mxu0
    %1033 = vmatprep.mubr.bf16.mxu0 0
    %1034 = vmatmul.mubr.bf16.gmra.mrb[0].mxu0 %v991
    %v1035 = vpop.f32.mrb[0].mxu0
    %v1036 = vadd.f32 0.0, %v1035
    %v1037 = vpop.f32.mrb[0].mxu0
    %v1038 = vpop.f32.mrb[0].mxu0
    %v1039 = vadd.f32 0.0, %v1038
    %v1040 = vpop.f32.mrb[0].mxu0
    %1041 = vdwg.mxu0
    %v1042 = vsel %vm50, %v827, 0.0
    %v1043 = vsel %vm50, %v894, 0.0
    %v1044 = vadd.f32 %v1042, %v1043
    %v1045 = vsel %vm50, %v961, 0.0
    %v1046 = vadd.f32 %v1044, %v1045
    %v1047 = vsel %vm50, %v1028, 0.0
    %v1048 = vadd.f32 %v1046, %v1047
    %v1049 = vsel %vm50, %v830, 0.0
    %v1050 = vsel %vm50, %v897, 0.0
    %v1051 = vadd.f32 %v1049, %v1050
    %v1052 = vsel %vm50, %v964, 0.0
    %v1053 = vadd.f32 %v1051, %v1052
    %v1054 = vsel %vm50, %v1031, 0.0
    %v1055 = vadd.f32 %v1053, %v1054
    %v1056 = vsel %vm50, %v835, 0.0
    %v1057 = vsel %vm50, %v902, 0.0
    %v1058 = vadd.f32 %v1056, %v1057
    %v1059 = vsel %vm50, %v969, 0.0
    %v1060 = vadd.f32 %v1058, %v1059
    %v1061 = vsel %vm50, %v1036, 0.0
    %v1062 = vadd.f32 %v1060, %v1061
    %v1063 = vsel %vm50, %v838, 0.0
    %v1064 = vsel %vm50, %v905, 0.0
    %v1065 = vadd.f32 %v1063, %v1064
    %v1066 = vsel %vm50, %v972, 0.0
    %v1067 = vadd.f32 %v1065, %v1066
    %v1068 = vsel %vm50, %v1039, 0.0
    %v1069 = vadd.f32 %v1067, %v1068
    %v1070 = vadd.f32 %v46, %v1048
    %v1071 = vadd.f32 %v47, %v1055
    %v1072 = vadd.f32 %v48, %v1062
    %v1073 = vadd.f32 %v49, %v1069
    %v1074 = vld [vmem:[%s8] sm:$0x1]
    %v1076 = vlaneseq
    %v1077 = vshrl.u32 %v1076, 7
    %v1078 = vsub.s32 0, %v1077
    %v1079 = vrot.slane %v1074, %v1078
    %v1081 = vadd.f32 %v1070, %v1079
    %v1082 = vadd.f32 %v1071, %v1079
    %v1083 = vadd.f32 %v1072, %v1079
    %v1084 = vadd.f32 %v1073, %v1079
    %v1085 = vsel %vm50, %v1081, 0.0
    %1086 = vadd.xlane.f32.xlu0 %v1085
    %v1087 = vpop.xlane.xlu0 %1086
    %v1088 = vsel %vm50, %v1082, 0.0
    %1089 = vadd.xlane.f32.xlu0 %v1088
    %v1090 = vpop.xlane.xlu0 %1089
    %v1091 = vsel %vm50, %v1083, 0.0
    %1092 = vadd.xlane.f32.xlu0 %v1091
    %v1093 = vpop.xlane.xlu0 %1092
    %v1094 = vsel %vm50, %v1084, 0.0
    %1095 = vadd.xlane.f32.xlu0 %v1094
    %v1096 = vpop.xlane.xlu0 %1095
    %v1097 = vmul.f32 %v1087, %v63
    %v1098 = vmul.f32 %v1090, %v63
    %v1099 = vmul.f32 %v1093, %v63
    %v1100 = vmul.f32 %v1096, %v63
    %v1101 = vsub.f32 %v1081, %v1097
    %v1102 = vsub.f32 %v1082, %v1098
    %v1103 = vsub.f32 %v1083, %v1099
    %v1104 = vsub.f32 %v1084, %v1100
    %v1105 = vmul.f32 %v1101, %v1101
    %v1106 = vmul.f32 %v1102, %v1102
    %v1107 = vmul.f32 %v1103, %v1103
    %v1108 = vmul.f32 %v1104, %v1104
    %v1109 = vsel %vm50, %v1105, 0.0
    %1110 = vadd.xlane.f32.xlu0 %v1109
    %v1111 = vpop.xlane.xlu0 %1110
    %v1112 = vsel %vm50, %v1106, 0.0
    %1113 = vadd.xlane.f32.xlu0 %v1112
    %v1114 = vpop.xlane.xlu0 %1113
    %v1115 = vsel %vm50, %v1107, 0.0
    %1116 = vadd.xlane.f32.xlu0 %v1115
    %v1117 = vpop.xlane.xlu0 %1116
    %v1118 = vsel %vm50, %v1108, 0.0
    %1119 = vadd.xlane.f32.xlu0 %v1118
    %v1120 = vpop.xlane.xlu0 %1119
    %v1121 = vmul.f32 %v1111, %v63
    %v1122 = vmul.f32 %v1114, %v63
    %v1123 = vmul.f32 %v1117, %v63
    %v1124 = vmul.f32 %v1120, %v63
    %v1125 = vadd.f32 %v1121, 1e-05
    %v1126 = vadd.f32 %v1122, 1e-05
    %v1127 = vadd.f32 %v1123, 1e-05
    %v1128 = vadd.f32 %v1124, 1e-05
    %v1129 = vrsqrt.pop %v1125
    %v1130 = vrsqrt.pop %v1126
    %v1131 = vrsqrt.pop %v1127
    %v1132 = vrsqrt.pop %v1128
    %v1133 = vmul.f32 %v1101, %v1129
    %v1134 = vmul.f32 %v1102, %v1130
    %v1135 = vmul.f32 %v1103, %v1131
    %v1136 = vmul.f32 %v1104, %v1132
    %v1137 = vpack.c.bf16 %v1134, %v1133
    %v1138 = vpack.c.bf16 %v1136, %v1135
    %v1139 = vld [vmem:[%s9] sm:$0xf]
    %v1140 = vld [vmem:[%s9 + $0x4] sm:$0xf]
    %v1141 = vld [vmem:[%s9 + $0x8] sm:$0xf]
    %v1142 = vld [vmem:[%s9 + $0xc] sm:$0xf]
    %v1143 = vld [vmem:[%s10] sm:$0x1]
    %v1145 = vlaneseq
    %v1146 = vshrl.u32 %v1145, 7
    %v1147 = vsub.s32 0, %v1146
    %v1148 = vrot.slane %v1143, %v1147
    %v1154 = vunpack.c.l.b16 %v1139
    %v1155 = vunpack.c.l.b16 %v1140
    %v1156 = vunpack.c.l.b16 %v1141
    %v1157 = vunpack.c.l.b16 %v1142
    %v1158 = vpack.c.b16 %v1155, %v1154
    %v1159 = vpack.c.b16 %v1157, %v1156
    %v1163 = vsel %vm50, %v1137, 0
    %v1166 = vsel %vm50, %v1138, 0
    %1168 = vmatprep.subr.bf16.mxu0 0
    %1169 = vmatpush1.bf16.msra.mxu0 %v1158
    %1170 = vmatprep.subr.bf16.mxu0 0
    %1171 = vmatpush1.bf16.msra.mxu0 %v1159
    %1172 = vmatprep.subr.bf16.mxu0 0
    %1173 = vmatpush1.bf16.msra.mxu0 0
    %1174 = vmatprep.subr.bf16.mxu0 0
    %1175 = vmatpush1.bf16.msra.mxu0 0
    %1176 = vmatprep.subr.bf16.mxu0 0
    %1177 = vmatpush1.bf16.msra.mxu0 0
    %1178 = vmatprep.subr.bf16.mxu0 0
    %1179 = vmatpush1.bf16.msra.mxu0 0
    %1180 = vmatprep.subr.bf16.mxu0 0
    %1181 = vmatpush1.bf16.msra.mxu0 0
    %1182 = vmatprep.subr.bf16.mxu0 0
    %1183 = vmatpush1.bf16.msra.mxu0 0
    %1184 = vmatprep.subr.bf16.mxu0 0
    %1185 = vmatpush1.bf16.msra.mxu0 0
    %1186 = vmatprep.subr.bf16.mxu0 0
    %1187 = vmatpush1.bf16.msra.mxu0 0
    %1188 = vmatprep.subr.bf16.mxu0 0
    %1189 = vmatpush1.bf16.msra.mxu0 0
    %1190 = vmatprep.subr.bf16.mxu0 0
    %1191 = vmatpush1.bf16.msra.mxu0 0
    %1192 = vmatprep.subr.bf16.mxu0 0
    %1193 = vmatpush1.bf16.msra.mxu0 0
    %1194 = vmatprep.subr.bf16.mxu0 0
    %1195 = vmatpush1.bf16.msra.mxu0 0
    %1196 = vmatprep.subr.bf16.mxu0 0
    %1197 = vmatpush1.bf16.msra.mxu0 0
    %1198 = vmatprep.subr.bf16.mxu0 0
    %1199 = vmatpush1.bf16.msra.mxu0 0
    %1200 = vmatprep.mubr.bf16.mxu0 0
    %1201 = vmatmul.mubr.bf16.gmra.mrb[0].mxu0 %v1163
    %v1202 = vpop.f32.mrb[0].mxu0
    %v1203 = vadd.f32 %v1148, %v1202
    %v1204 = vpop.f32.mrb[0].mxu0
    %v1205 = vpop.f32.mrb[0].mxu0
    %v1206 = vadd.f32 %v1148, %v1205
    %v1207 = vpop.f32.mrb[0].mxu0
    %1208 = vmatprep.mubr.bf16.mxu0 0
    %1209 = vmatmul.mubr.bf16.gmra.mrb[0].mxu0 %v1166
    %v1210 = vpop.f32.mrb[0].mxu0
    %v1211 = vadd.f32 %v1148, %v1210
    %v1212 = vpop.f32.mrb[0].mxu0
    %v1213 = vpop.f32.mrb[0].mxu0
    %v1214 = vadd.f32 %v1148, %v1213
    %v1215 = vpop.f32.mrb[0].mxu0
    %1216 = vdwg.mxu0
    %v1217 = vmul.f32 %v1203, 0.5
    %v1218 = vmul.f32 %v1206, 0.5
    %v1219 = vmul.f32 %v1211, 0.5
    %v1220 = vmul.f32 %v1214, 0.5
    %v1221 = vmul.f32 %v1203, 0.044715
    %v1222 = vmul.f32 %v1206, 0.044715
    %v1223 = vmul.f32 %v1211, 0.044715
    %v1224 = vmul.f32 %v1214, 0.044715
    %v1225 = vmul.f32 %v1221, %v1203
    %v1226 = vmul.f32 %v1222, %v1206
    %v1227 = vmul.f32 %v1223, %v1211
    %v1228 = vmul.f32 %v1224, %v1214
    %v1229 = vmul.f32 %v1225, %v1203
    %v1230 = vmul.f32 %v1226, %v1206
    %v1231 = vmul.f32 %v1227, %v1211
    %v1232 = vmul.f32 %v1228, %v1214
    %v1233 = vadd.f32 %v1203, %v1229
    %v1234 = vadd.f32 %v1206, %v1230
    %v1235 = vadd.f32 %v1211, %v1231
    %v1236 = vadd.f32 %v1214, %v1232
    %v1237 = vmul.f32 %v1233, 0.7978846
    %v1238 = vmul.f32 %v1234, 0.7978846
    %v1239 = vmul.f32 %v1235, 0.7978846
    %v1240 = vmul.f32 %v1236, 0.7978846
    %v1241 = vtanh.pop %v1237
    %v1242 = vtanh.pop %v1238
    %v1243 = vtanh.pop %v1239
    %v1244 = vtanh.pop %v1240
    %v1245 = vadd.f32 %v1241, 1.0
    %v1246 = vadd.f32 %v1242, 1.0
    %v1247 = vadd.f32 %v1243, 1.0
    %v1248 = vadd.f32 %v1244, 1.0
    %v1249 = vmul.f32 %v1217, %v1245
    %v1250 = vmul.f32 %v1218, %v1246
    %v1251 = vmul.f32 %v1219, %v1247
    %v1252 = vmul.f32 %v1220, %v1248
    %v1253 = vpack.c.bf16 %v1250, %v1249
    %v1254 = vpack.c.bf16 %v1252, %v1251
    %v1255 = vld [vmem:[%s11] sm:$0xf]
    %v1256 = vld [vmem:[%s11 + $0x4] sm:$0xf]
    %v1257 = vld [vmem:[%s11 + $0x8] sm:$0xf]
    %v1258 = vld [vmem:[%s11 + $0xc] sm:$0xf]
    %v1259 = vld [vmem:[%s11 + $0x10] sm:$0xf]
    %v1260 = vld [vmem:[%s11 + $0x14] sm:$0xf]
    %v1261 = vld [vmem:[%s11 + $0x18] sm:$0xf]
    %v1262 = vld [vmem:[%s11 + $0x1c] sm:$0xf]
    %v1263 = vld [vmem:[%s11 + $0x20] sm:$0xf]
    %v1264 = vld [vmem:[%s11 + $0x24] sm:$0xf]
    %v1265 = vld [vmem:[%s11 + $0x28] sm:$0xf]
    %v1266 = vld [vmem:[%s11 + $0x2c] sm:$0xf]
    %v1267 = vld [vmem:[%s11 + $0x30] sm:$0xf]
    %v1268 = vld [vmem:[%s11 + $0x34] sm:$0xf]
    %v1269 = vld [vmem:[%s11 + $0x38] sm:$0xf]
    %v1270 = vld [vmem:[%s11 + $0x3c] sm:$0xf]
    %v1271 = vld [vmem:[%s12] sm:$0x1]
    %v1273 = vlaneseq
    %v1274 = vshrl.u32 %v1273, 7
    %v1275 = vsub.s32 0, %v1274
    %v1276 = vrot.slane %v1271, %v1275
    %v1294 = vunpack.c.l.b16 %v1255
    %v1295 = vunpack.c.l.b16 %v1256
    %v1296 = vunpack.c.l.b16 %v1257
    %v1297 = vunpack.c.l.b16 %v1258
    %v1298 = vunpack.c.l.b16 %v1259
    %v1299 = vunpack.c.l.b16 %v1260
    %v1300 = vunpack.c.l.b16 %v1261
    %v1301 = vunpack.c.l.b16 %v1262
    %v1302 = vunpack.c.l.b16 %v1263
    %v1303 = vunpack.c.l.b16 %v1264
    %v1304 = vunpack.c.l.b16 %v1265
    %v1305 = vunpack.c.l.b16 %v1266
    %v1306 = vunpack.c.l.b16 %v1267
    %v1307 = vunpack.c.l.b16 %v1268
    %v1308 = vunpack.c.l.b16 %v1269
    %v1309 = vunpack.c.l.b16 %v1270
    %v1310 = vpack.c.b16 %v1295, %v1294
    %v1311 = vpack.c.b16 %v1297, %v1296
    %v1312 = vpack.c.b16 %v1299, %v1298
    %v1313 = vpack.c.b16 %v1301, %v1300
    %v1314 = vpack.c.b16 %v1303, %v1302
    %v1315 = vpack.c.b16 %v1305, %v1304
    %v1316 = vpack.c.b16 %v1307, %v1306
    %v1317 = vpack.c.b16 %v1309, %v1308
    %1326 = vmatprep.subr.bf16.mxu0 0
    %1327 = vmatpush1.bf16.msra.mxu0 %v1310
    %1328 = vmatprep.subr.bf16.mxu0 0
    %1329 = vmatpush1.bf16.msra.mxu0 %v1311
    %1330 = vmatprep.subr.bf16.mxu0 0
    %1331 = vmatpush1.bf16.msra.mxu0 %v1312
    %1332 = vmatprep.subr.bf16.mxu0 0
    %1333 = vmatpush1.bf16.msra.mxu0 %v1313
    %1334 = vmatprep.subr.bf16.mxu0 0
    %1335 = vmatpush1.bf16.msra.mxu0 %v1314
    %1336 = vmatprep.subr.bf16.mxu0 0
    %1337 = vmatpush1.bf16.msra.mxu0 %v1315
    %1338 = vmatprep.subr.bf16.mxu0 0
    %1339 = vmatpush1.bf16.msra.mxu0 %v1316
    %1340 = vmatprep.subr.bf16.mxu0 0
    %1341 = vmatpush1.bf16.msra.mxu0 %v1317
    %1342 = vmatprep.subr.bf16.mxu0 0
    %1343 = vmatpush1.bf16.msra.mxu0 0
    %1344 = vmatprep.subr.bf16.mxu0 0
    %1345 = vmatpush1.bf16.msra.mxu0 0
    %1346 = vmatprep.subr.bf16.mxu0 0
    %1347 = vmatpush1.bf16.msra.mxu0 0
    %1348 = vmatprep.subr.bf16.mxu0 0
    %1349 = vmatpush1.bf16.msra.mxu0 0
    %1350 = vmatprep.subr.bf16.mxu0 0
    %1351 = vmatpush1.bf16.msra.mxu0 0
    %1352 = vmatprep.subr.bf16.mxu0 0
    %1353 = vmatpush1.bf16.msra.mxu0 0
    %1354 = vmatprep.subr.bf16.mxu0 0
    %1355 = vmatpush1.bf16.msra.mxu0 0
    %1356 = vmatprep.subr.bf16.mxu0 0
    %1357 = vmatpush1.bf16.msra.mxu0 0
    %1358 = vmatprep.mubr.bf16.mxu0 0
    %1359 = vmatmul.mubr.bf16.gmra.mrb[0].mxu0 %v1253
    %v1360 = vpop.f32.mrb[0].mxu0
    %v1361 = vadd.f32 %v1276, %v1360
    %v1362 = vpop.f32.mrb[0].mxu0
    %v1363 = vpop.f32.mrb[0].mxu0
    %v1364 = vadd.f32 %v1276, %v1363
    %v1365 = vpop.f32.mrb[0].mxu0
    %1366 = vmatprep.mubr.bf16.mxu0 0
    %1367 = vmatmul.mubr.bf16.gmra.mrb[0].mxu0 %v1254
    %v1368 = vpop.f32.mrb[0].mxu0
    %v1369 = vadd.f32 %v1276, %v1368
    %v1370 = vpop.f32.mrb[0].mxu0
    %v1371 = vpop.f32.mrb[0].mxu0
    %v1372 = vadd.f32 %v1276, %v1371
    %v1373 = vpop.f32.mrb[0].mxu0
    %1374 = vdwg.mxu0
    %v1375 = vadd.f32 %v1081, %v1361
    %v1376 = vadd.f32 %v1082, %v1364
    %v1377 = vadd.f32 %v1083, %v1369
    %v1378 = vadd.f32 %v1084, %v1372
    %1379 = vst.msk [vmem:[#allocation2] sm:$0xff] %vm50, %v1375
    %1380 = vst.msk [vmem:[#allocation2 + $0x8] sm:$0xff] %vm50, %v1376
    %1381 = vst.msk [vmem:[#allocation2 + $0x10] sm:$0xff] %vm50, %v1377
    %1382 = vst.msk [vmem:[#allocation2 + $0x18] sm:$0xff] %vm50, %v1378
    // Predicated region
    $region54: #{gpt_block.1} parent=1 // pred_check
      _
    $region55: #{gpt_block.1} parent=1 // pred_check_branch
      %1384 = sbr.rel (0) target = $region57
    $region56: #{gpt_block.1} parent=1 // pred_region
      %s1386 = ssub.s32 512, 512
      %1387 = vsyncadd [#allocation3], %s1386
      %s1388 = sshll.u32 [#allocation2], 4
      %s1389 = int_to_ptr.vmem [resolvable:$true] %s1388
      %1394 = dma.vmem_to_hbm [thread:$0]  %s1389, 512, %s13, [#allocation3], 128, 128, 8
    $region57: #{gpt_block.1} parent=1 // pred_fallthru
      _
    // Predicated region
    $region58: #{gpt_block.1} parent=1 // pred_check
      _
    $region59: #{gpt_block.1} parent=1 // pred_check_branch
      %1396 = sbr.rel (0) target = $region61
    $region60: #{gpt_block.1} parent=1 // pred_region
      %1397 = dma.done [#allocation3], 512
    $region61: #{gpt_block.1} parent=1 // pred_fallthru
      _
    %1398 = vsyncpa [#allocation3], 1

</llo_original>
